<compile_context>
chip_gen: v6e
topology: v6e:2x2x1
jax: 0.10.0
libtpu: 0.0.40
codegen_flags: <defaults>
</compile_context>

<pallas_src>
import functools

import numpy as np
import jax
import jax.numpy as jnp
from jax import lax
from jax.experimental import pallas as pl
from jax.experimental.pallas import tpu as pltpu

NEG_SLOPE = 0.01  # F.leaky_relu default


def _leaky_relu(x):
    return jnp.where(x > 0, x, NEG_SLOPE * x)


def _round_up(x, m):
    return ((x + m - 1) // m) * m


def clusterer_kernel(x_ref, w1_ref, b1_ref, w2_ref, b2_ref, w3_ref, b3_ref,
                     sg_ref, o_ref, *, groups):
    """Forward pass for one batch tile. All operands are VMEM-resident."""
    x = x_ref[...]                                   # (TB, in)  bf16
    cdt = x.dtype

    # map1 + leaky_relu  (MXU matmul, f32 accumulate)
    h = jnp.dot(x, w1_ref[...], preferred_element_type=jnp.float32) + b1_ref[...]
    h = _leaky_relu(h).astype(cdt)

    # map2 + leaky_relu
    h = jnp.dot(h, w2_ref[...], preferred_element_type=jnp.float32) + b2_ref[...]
    h = _leaky_relu(h).astype(cdt)

    # map3 -> logits (f32), lane-padded to a multiple of 128
    logits = jnp.dot(h, w3_ref[...], preferred_element_type=jnp.float32) + b3_ref[...]

    # ---- grouped softmax over dim=1, vectorized over the full (TB, OTp) tile ----
    ot = logits.shape[-1]
    col = lax.broadcasted_iota(jnp.int32, (1, ot), 1)        # lane index per column
    neg = jnp.float32(-1e30)

    # segment max via full-width masked reduces (static, tiny loop over groups;
    # the lane-pad columns are their own group, so their exp stays finite)
    max_full = jnp.zeros(logits.shape, dtype=jnp.float32)
    start = 0
    for sz in groups:
        in_g = (col >= start) & (col < start + sz)           # (1, OTp)
        m_g = jnp.max(jnp.where(in_g, logits, neg), axis=-1, keepdims=True)  # (TB, 1)
        max_full = jnp.where(in_g, m_g, max_full)
        start += sz

    e = jnp.exp(logits - max_full)                           # one exp over whole tile (EUP)
    eb = e.astype(sg_ref.dtype)                              # bf16: MXU operand + numerator

    # Per-group denominators for every column via a single (OTp, OTp) one-hot matmul
    # (bf16 operands, f32 accumulation). Numerator and denominator both come from
    # `eb`, and the divide is exact, so per-group rows sum to 1 up to f32 rounding.
    denom = jnp.dot(eb, sg_ref[...], preferred_element_type=jnp.float32)
    o_ref[...] = (eb.astype(jnp.float32) / denom).astype(o_ref.dtype)


def clusterer_forward(x, params, outputs, *, tile_b=1024,
                      compute_dtype=jnp.bfloat16, out_dtype=jnp.float32):
    """params: torch-style Linear params (W: (out, in), b: (out,))."""
    outputs = tuple(int(o) for o in outputs)
    out_total = int(sum(outputs))
    B, in_size = x.shape
    hidden = params["w1"].shape[0]

    # Lane-pad hidden / out_total to multiples of 128 (unmasked stores, full MXU lanes).
    hidden_p = _round_up(hidden, 128)
    out_p = _round_up(out_total, 128)
    pad_o = out_p - out_total
    groups = outputs + ((pad_o,) if pad_o else ())   # pad columns = their own softmax group

    def pad2(a, rows, cols):
        return jnp.pad(a, ((0, rows - a.shape[0]), (0, cols - a.shape[1])))

    # Pre-transpose so the kernel does plain x @ W + b; matmul operands in bf16
    # (halves weight VMEM + streamed-x HBM traffic), biases / softmax math in f32.
    w1 = pad2(params["w1"].T, in_size, hidden_p).astype(compute_dtype)    # (in, Hp)
    w2 = pad2(params["w2"].T, hidden_p, hidden_p).astype(compute_dtype)   # (Hp, Hp)
    w3 = pad2(params["w3"].T, hidden_p, out_p).astype(compute_dtype)      # (Hp, OTp)
    b1 = jnp.pad(params["b1"], (0, hidden_p - hidden))[None, :].astype(jnp.float32)
    b2 = jnp.pad(params["b2"], (0, hidden_p - hidden))[None, :].astype(jnp.float32)
    b3 = jnp.pad(params["b3"], (0, pad_o))[None, :].astype(jnp.float32)   # (1, OTp)

    # (OTp, OTp) one-hot: same_group[i, j] = 1 iff columns i, j share a softmax group
    # (pad block included so pad-lane denominators are finite). bf16 for the MXU.
    gid = np.concatenate([np.full((s,), g, dtype=np.int32) for g, s in enumerate(groups)])
    same_group = jnp.asarray((gid[:, None] == gid[None, :]).astype(np.float32)).astype(compute_dtype)

    # Batch tiling: tb multiple of 16 (bf16 sublane packing) and >= 2 grid steps so
    # dimension_semantics=("parallel",) can shard the batch over v7x's 2 TensorCores.
    if B >= 2 * tile_b:
        tb = int(tile_b)
    else:
        tb = max(16, _round_up((B + 1) // 2, 16))
    padded_b = max(_round_up(B, tb), 2 * tb)
    if padded_b != B:
        x = jnp.pad(x, ((0, padded_b - B), (0, 0)))
    x = x.astype(compute_dtype)
    grid_b = padded_b // tb

    # Explicit VMEM budget: resident weights (+headroom for double buffering if the
    # single-buffer request is ignored) + double-buffered x/out tiles + f32 intermediates.
    bpe_c = jnp.dtype(compute_dtype).itemsize
    bpe_o = jnp.dtype(out_dtype).itemsize
    weight_bytes = (in_size * hidden_p + hidden_p * hidden_p + hidden_p * out_p
                    + out_p * out_p) * bpe_c + (2 * hidden_p + out_p) * 4
    stream_bytes = 2 * tb * in_size * bpe_c + 2 * tb * out_p * bpe_o
    act_bytes = tb * (3 * hidden_p + 4 * out_p) * 4
    vmem_limit = int(min(max(2 * weight_bytes + stream_bytes + act_bytes + (8 << 20),
                             32 << 20), 64 << 20))

    cost = pl.CostEstimate(
        flops=2 * padded_b * (in_size * hidden_p + hidden_p * hidden_p
                              + hidden_p * out_p + out_p * out_p),
        transcendentals=padded_b * out_p,
        bytes_accessed=padded_b * in_size * bpe_c + padded_b * out_p * bpe_o + weight_bytes,
    )

    kernel = functools.partial(clusterer_kernel, groups=groups)
    operands = (x, w1, b1, w2, b2, w3, b3, same_group)

    # TODO(synk): add a hidden-dim ("arbitrary") grid axis with an f32 accumulator so W2
    # need not be fully VMEM-resident when hidden >= ~2048 (matters on v7x's 64 MiB VMEM).
    def make_call(single_buffer_weights):
        def resident(shape):
            if single_buffer_weights:
                return pl.BlockSpec(shape, lambda i: (0, 0),
                                    pipeline_mode=pl.Buffered(buffer_count=1))
            return pl.BlockSpec(shape, lambda i: (0, 0))

        return pl.pallas_call(
            kernel,
            out_shape=jax.ShapeDtypeStruct((padded_b, out_p), out_dtype),
            grid=(grid_b,),
            in_specs=[
                pl.BlockSpec((tb, in_size), lambda i: (i, 0)),   # x: streamed over batch
                resident((in_size, hidden_p)),                   # weights: VMEM-resident
                resident((1, hidden_p)),
                resident((hidden_p, hidden_p)),
                resident((1, hidden_p)),
                resident((hidden_p, out_p)),
                resident((1, out_p)),
                resident((out_p, out_p)),                        # same-group one-hot
            ],
            out_specs=pl.BlockSpec((tb, out_p), lambda i: (i, 0)),
            compiler_params=pltpu.CompilerParams(
                dimension_semantics=("parallel",),               # megacore-shardable
                vmem_limit_bytes=vmem_limit),
            cost_estimate=cost,
        )

    try:
        out = jax.block_until_ready(make_call(True)(*operands))
    except Exception:
        # Builds/interpreters without pipeline_mode=Buffered support: fall back to the
        # default (double-buffered) pipeline for the grid-invariant operands.
        out = make_call(False)(*operands)

    return out[:B, :out_total]


def init_params(key, input_size, hidden_size, out_total):
    """Deterministic torch-like init: U(-1/sqrt(fan_in), 1/sqrt(fan_in))."""
    ks = jax.random.split(key, 6)

    def lin(kw, kb, fan_in, fan_out):
        bound = 1.0 / jnp.sqrt(fan_in)
        w = jax.random.uniform(kw, (fan_out, fan_in), jnp.float32, -bound, bound)
        b = jax.random.uniform(kb, (fan_out,), jnp.float32, -bound, bound)
        return w, b

    w1, b1 = lin(ks[0], ks[1], input_size, hidden_size)
    w2, b2 = lin(ks[2], ks[3], hidden_size, hidden_size)
    w3, b3 = lin(ks[4], ks[5], hidden_size, out_total)
    return {"w1": w1, "b1": b1, "w2": w2, "b2": b2, "w3": w3, "b3": b3}


def reference_forward(x, params, outputs):
    """Pure-JAX f32 reference mirroring the PyTorch module."""
    h = jax.nn.leaky_relu(x @ params["w1"].T + params["b1"], NEG_SLOPE)
    h = jax.nn.leaky_relu(h @ params["w2"].T + params["b2"], NEG_SLOPE)
    logits = h @ params["w3"].T + params["b3"]
    segs, start = [], 0
    for sz in outputs:
        segs.append(jax.nn.softmax(logits[:, start:start + sz], axis=1))
        start += sz
    return jnp.concatenate(segs, axis=1)


if __name__ == "__main__":
    # Small shapes consistent with the module's forward (2-D input to Linear).
    batch = 8
    input_size = 16
    hidden_size = 32
    outputs = (4, 8, 4)   # list-style output_size -> grouped softmax + concat
    out_total = int(sum(outputs))

    key = jax.random.PRNGKey(0)
    kx, kp = jax.random.split(key)
    x = jax.random.normal(kx, (batch, input_size), dtype=jnp.float32)
    params = init_params(kp, input_size, hidden_size, out_total)

    y = clusterer_forward(x, params, outputs)
    y = jax.block_until_ready(y)

    y_ref = reference_forward(x, params, outputs)
    assert y.shape == (batch, out_total)
    # bf16 matmul operands -> compare at bf16-appropriate tolerance.
    assert jnp.allclose(y, y_ref, atol=2e-2, rtol=2e-2), "mismatch vs reference"
    # per-group rows sum to 1 (exact divide; only f32 rounding remains)
    start = 0
    for sz in outputs:
        assert jnp.allclose(jnp.sum(y[:, start:start + sz], axis=1), 1.0, atol=2e-3)
        start += sz

    print("KERNEL_OK")
</pallas_src>

<mosaic_0001>
module attributes {stable_mosaic.version = 11 : i64} {
  func.func @clusterer_kernel(%arg0: i32, %arg1: memref<16x16xbf16, #tpu.memory_space<vmem>>, %arg2: memref<16x128xbf16, #tpu.memory_space<vmem>>, %arg3: memref<1x128xf32, #tpu.memory_space<vmem>>, %arg4: memref<128x128xbf16, #tpu.memory_space<vmem>>, %arg5: memref<1x128xf32, #tpu.memory_space<vmem>>, %arg6: memref<128x128xbf16, #tpu.memory_space<vmem>>, %arg7: memref<1x128xf32, #tpu.memory_space<vmem>>, %arg8: memref<128x128xbf16, #tpu.memory_space<vmem>>, %arg9: memref<16x128xf32, #tpu.memory_space<vmem>>) attributes {dimension_semantics = [#tpu.dimension_semantics<parallel>], iteration_bounds = array<i64: 2>, scalar_prefetch = 0 : i64, scratch_operands = 0 : i64, tpu.core_type = #tpu.core_type<tc>, window_params = [{transform_indices = @transform_0, window_bounds = array<i64: 16, 16>}, {pipeline_mode = #tpu.pipeline_mode<synchronous>, transform_indices = @transform_1, window_bounds = array<i64: 16, 128>}, {pipeline_mode = #tpu.pipeline_mode<synchronous>, transform_indices = @transform_2, window_bounds = array<i64: 1, 128>}, {pipeline_mode = #tpu.pipeline_mode<synchronous>, transform_indices = @transform_3, window_bounds = array<i64: 128, 128>}, {pipeline_mode = #tpu.pipeline_mode<synchronous>, transform_indices = @transform_4, window_bounds = array<i64: 1, 128>}, {pipeline_mode = #tpu.pipeline_mode<synchronous>, transform_indices = @transform_5, window_bounds = array<i64: 128, 128>}, {pipeline_mode = #tpu.pipeline_mode<synchronous>, transform_indices = @transform_6, window_bounds = array<i64: 1, 128>}, {pipeline_mode = #tpu.pipeline_mode<synchronous>, transform_indices = @transform_7, window_bounds = array<i64: 128, 128>}, {transform_indices = @transform_8, window_bounds = array<i64: 16, 128>}]} {
    %c0 = arith.constant 0 : index
    %c0_0 = arith.constant 0 : index
    %0 = vector.load %arg1[%c0, %c0_0] : memref<16x16xbf16, #tpu.memory_space<vmem>>, vector<16x16xbf16>
    %c0_1 = arith.constant 0 : index
    %c0_2 = arith.constant 0 : index
    %1 = vector.load %arg2[%c0_1, %c0_2] : memref<16x128xbf16, #tpu.memory_space<vmem>>, vector<16x128xbf16>
    %cst = arith.constant dense<0.000000e+00> : vector<16x128xf32>
    %2 = tpu.matmul %0, %1, %cst {dimension_numbers = #tpu.dot_dimension_numbers<[1], [0], [0], [1], [0, 0, 1, 1], [], []>} : vector<16x16xbf16>, vector<16x128xbf16>, vector<16x128xf32> -> vector<16x128xf32>
    %c0_3 = arith.constant 0 : index
    %c0_4 = arith.constant 0 : index
    %3 = vector.load %arg3[%c0_3, %c0_4] : memref<1x128xf32, #tpu.memory_space<vmem>>, vector<1x128xf32>
    %4 = vector.broadcast %3 : vector<1x128xf32> to vector<16x128xf32>
    %5 = arith.addf %2, %4 : vector<16x128xf32>
    %cst_5 = arith.constant 0.000000e+00 : f32
    %6 = vector.broadcast %cst_5 : f32 to vector<16x128xf32>
    %7 = arith.cmpf ogt, %5, %6 : vector<16x128xf32>
    %cst_6 = arith.constant 0.00999999977 : f32
    %8 = vector.broadcast %cst_6 : f32 to vector<16x128xf32>
    %9 = arith.mulf %8, %5 : vector<16x128xf32>
    %10 = arith.select %7, %5, %9 : vector<16x128xi1>, vector<16x128xf32>
    %11 = arith.truncf %10 : vector<16x128xf32> to vector<16x128xbf16>
    %c0_7 = arith.constant 0 : index
    %c0_8 = arith.constant 0 : index
    %12 = vector.load %arg4[%c0_7, %c0_8] : memref<128x128xbf16, #tpu.memory_space<vmem>>, vector<128x128xbf16>
    %cst_9 = arith.constant dense<0.000000e+00> : vector<16x128xf32>
    %13 = tpu.matmul %11, %12, %cst_9 {dimension_numbers = #tpu.dot_dimension_numbers<[1], [0], [0], [1], [0, 0, 1, 1], [], []>} : vector<16x128xbf16>, vector<128x128xbf16>, vector<16x128xf32> -> vector<16x128xf32>
    %c0_10 = arith.constant 0 : index
    %c0_11 = arith.constant 0 : index
    %14 = vector.load %arg5[%c0_10, %c0_11] : memref<1x128xf32, #tpu.memory_space<vmem>>, vector<1x128xf32>
    %15 = vector.broadcast %14 : vector<1x128xf32> to vector<16x128xf32>
    %16 = arith.addf %13, %15 : vector<16x128xf32>
    %cst_12 = arith.constant 0.000000e+00 : f32
    %17 = vector.broadcast %cst_12 : f32 to vector<16x128xf32>
    %18 = arith.cmpf ogt, %16, %17 : vector<16x128xf32>
    %cst_13 = arith.constant 0.00999999977 : f32
    %19 = vector.broadcast %cst_13 : f32 to vector<16x128xf32>
    %20 = arith.mulf %19, %16 : vector<16x128xf32>
    %21 = arith.select %18, %16, %20 : vector<16x128xi1>, vector<16x128xf32>
    %22 = arith.truncf %21 : vector<16x128xf32> to vector<16x128xbf16>
    %c0_14 = arith.constant 0 : index
    %c0_15 = arith.constant 0 : index
    %23 = vector.load %arg6[%c0_14, %c0_15] : memref<128x128xbf16, #tpu.memory_space<vmem>>, vector<128x128xbf16>
    %cst_16 = arith.constant dense<0.000000e+00> : vector<16x128xf32>
    %24 = tpu.matmul %22, %23, %cst_16 {dimension_numbers = #tpu.dot_dimension_numbers<[1], [0], [0], [1], [0, 0, 1, 1], [], []>} : vector<16x128xbf16>, vector<128x128xbf16>, vector<16x128xf32> -> vector<16x128xf32>
    %c0_17 = arith.constant 0 : index
    %c0_18 = arith.constant 0 : index
    %25 = vector.load %arg7[%c0_17, %c0_18] : memref<1x128xf32, #tpu.memory_space<vmem>>, vector<1x128xf32>
    %26 = vector.broadcast %25 : vector<1x128xf32> to vector<16x128xf32>
    %27 = arith.addf %24, %26 : vector<16x128xf32>
    %28 = tpu.iota {dimensions = array<i32: 1>} : vector<1x128xi32>
    %cst_19 = arith.constant 0.000000e+00 : f32
    %29 = vector.broadcast %cst_19 : f32 to vector<16x128xf32>
    %c0_i32 = arith.constant 0 : i32
    %30 = vector.broadcast %c0_i32 : i32 to vector<1x128xi32>
    %31 = arith.cmpi sge, %28, %30 : vector<1x128xi32>
    %c4_i32 = arith.constant 4 : i32
    %32 = vector.broadcast %c4_i32 : i32 to vector<1x128xi32>
    %33 = arith.cmpi slt, %28, %32 : vector<1x128xi32>
    %34 = arith.andi %31, %33 : vector<1x128xi1>
    %cst_20 = arith.constant -1.000000e+30 : f32
    %35 = vector.shape_cast %34 : vector<1x128xi1> to vector<1x128xi1>
    %36 = vector.broadcast %35 : vector<1x128xi1> to vector<16x128xi1>
    %37 = vector.broadcast %cst_20 : f32 to vector<16x128xf32>
    %38 = arith.select %36, %27, %37 : vector<16x128xi1>, vector<16x128xf32>
    %cst_21 = arith.constant dense<0xFF800000> : vector<16xf32>
    %39 = vector.multi_reduction <maximumf>, %38, %cst_21 [1] : vector<16x128xf32> to vector<16xf32>
    %40 = vector.shape_cast %39 : vector<16xf32> to vector<16x1xf32>
    %41 = vector.shape_cast %34 : vector<1x128xi1> to vector<1x128xi1>
    %42 = vector.broadcast %41 : vector<1x128xi1> to vector<16x128xi1>
    %43 = vector.shape_cast %40 : vector<16x1xf32> to vector<16x1xf32>
    %44 = vector.broadcast %43 : vector<16x1xf32> to vector<16x128xf32>
    %45 = arith.select %42, %44, %29 : vector<16x128xi1>, vector<16x128xf32>
    %c4_i32_22 = arith.constant 4 : i32
    %46 = vector.broadcast %c4_i32_22 : i32 to vector<1x128xi32>
    %47 = arith.cmpi sge, %28, %46 : vector<1x128xi32>
    %c12_i32 = arith.constant 12 : i32
    %48 = vector.broadcast %c12_i32 : i32 to vector<1x128xi32>
    %49 = arith.cmpi slt, %28, %48 : vector<1x128xi32>
    %50 = arith.andi %47, %49 : vector<1x128xi1>
    %cst_23 = arith.constant -1.000000e+30 : f32
    %51 = vector.shape_cast %50 : vector<1x128xi1> to vector<1x128xi1>
    %52 = vector.broadcast %51 : vector<1x128xi1> to vector<16x128xi1>
    %53 = vector.broadcast %cst_23 : f32 to vector<16x128xf32>
    %54 = arith.select %52, %27, %53 : vector<16x128xi1>, vector<16x128xf32>
    %cst_24 = arith.constant dense<0xFF800000> : vector<16xf32>
    %55 = vector.multi_reduction <maximumf>, %54, %cst_24 [1] : vector<16x128xf32> to vector<16xf32>
    %56 = vector.shape_cast %55 : vector<16xf32> to vector<16x1xf32>
    %57 = vector.shape_cast %50 : vector<1x128xi1> to vector<1x128xi1>
    %58 = vector.broadcast %57 : vector<1x128xi1> to vector<16x128xi1>
    %59 = vector.shape_cast %56 : vector<16x1xf32> to vector<16x1xf32>
    %60 = vector.broadcast %59 : vector<16x1xf32> to vector<16x128xf32>
    %61 = arith.select %58, %60, %45 : vector<16x128xi1>, vector<16x128xf32>
    %c12_i32_25 = arith.constant 12 : i32
    %62 = vector.broadcast %c12_i32_25 : i32 to vector<1x128xi32>
    %63 = arith.cmpi sge, %28, %62 : vector<1x128xi32>
    %c16_i32 = arith.constant 16 : i32
    %64 = vector.broadcast %c16_i32 : i32 to vector<1x128xi32>
    %65 = arith.cmpi slt, %28, %64 : vector<1x128xi32>
    %66 = arith.andi %63, %65 : vector<1x128xi1>
    %cst_26 = arith.constant -1.000000e+30 : f32
    %67 = vector.shape_cast %66 : vector<1x128xi1> to vector<1x128xi1>
    %68 = vector.broadcast %67 : vector<1x128xi1> to vector<16x128xi1>
    %69 = vector.broadcast %cst_26 : f32 to vector<16x128xf32>
    %70 = arith.select %68, %27, %69 : vector<16x128xi1>, vector<16x128xf32>
    %cst_27 = arith.constant dense<0xFF800000> : vector<16xf32>
    %71 = vector.multi_reduction <maximumf>, %70, %cst_27 [1] : vector<16x128xf32> to vector<16xf32>
    %72 = vector.shape_cast %71 : vector<16xf32> to vector<16x1xf32>
    %73 = vector.shape_cast %66 : vector<1x128xi1> to vector<1x128xi1>
    %74 = vector.broadcast %73 : vector<1x128xi1> to vector<16x128xi1>
    %75 = vector.shape_cast %72 : vector<16x1xf32> to vector<16x1xf32>
    %76 = vector.broadcast %75 : vector<16x1xf32> to vector<16x128xf32>
    %77 = arith.select %74, %76, %61 : vector<16x128xi1>, vector<16x128xf32>
    %c16_i32_28 = arith.constant 16 : i32
    %78 = vector.broadcast %c16_i32_28 : i32 to vector<1x128xi32>
    %79 = arith.cmpi sge, %28, %78 : vector<1x128xi32>
    %c128_i32 = arith.constant 128 : i32
    %80 = vector.broadcast %c128_i32 : i32 to vector<1x128xi32>
    %81 = arith.cmpi slt, %28, %80 : vector<1x128xi32>
    %82 = arith.andi %79, %81 : vector<1x128xi1>
    %cst_29 = arith.constant -1.000000e+30 : f32
    %83 = vector.shape_cast %82 : vector<1x128xi1> to vector<1x128xi1>
    %84 = vector.broadcast %83 : vector<1x128xi1> to vector<16x128xi1>
    %85 = vector.broadcast %cst_29 : f32 to vector<16x128xf32>
    %86 = arith.select %84, %27, %85 : vector<16x128xi1>, vector<16x128xf32>
    %cst_30 = arith.constant dense<0xFF800000> : vector<16xf32>
    %87 = vector.multi_reduction <maximumf>, %86, %cst_30 [1] : vector<16x128xf32> to vector<16xf32>
    %88 = vector.shape_cast %87 : vector<16xf32> to vector<16x1xf32>
    %89 = vector.shape_cast %82 : vector<1x128xi1> to vector<1x128xi1>
    %90 = vector.broadcast %89 : vector<1x128xi1> to vector<16x128xi1>
    %91 = vector.shape_cast %88 : vector<16x1xf32> to vector<16x1xf32>
    %92 = vector.broadcast %91 : vector<16x1xf32> to vector<16x128xf32>
    %93 = arith.select %90, %92, %77 : vector<16x128xi1>, vector<16x128xf32>
    %94 = arith.subf %27, %93 : vector<16x128xf32>
    %95 = math.exp %94 : vector<16x128xf32>
    %96 = arith.truncf %95 : vector<16x128xf32> to vector<16x128xbf16>
    %c0_31 = arith.constant 0 : index
    %c0_32 = arith.constant 0 : index
    %97 = vector.load %arg8[%c0_31, %c0_32] : memref<128x128xbf16, #tpu.memory_space<vmem>>, vector<128x128xbf16>
    %cst_33 = arith.constant dense<0.000000e+00> : vector<16x128xf32>
    %98 = tpu.matmul %96, %97, %cst_33 {dimension_numbers = #tpu.dot_dimension_numbers<[1], [0], [0], [1], [0, 0, 1, 1], [], []>} : vector<16x128xbf16>, vector<128x128xbf16>, vector<16x128xf32> -> vector<16x128xf32>
    %99 = arith.extf %96 : vector<16x128xbf16> to vector<16x128xf32>
    %100 = arith.divf %99, %98 : vector<16x128xf32>
    %c0_34 = arith.constant 0 : index
    %c0_35 = arith.constant 0 : index
    %101 = vector.load %arg9[%c0_34, %c0_35] : memref<16x128xf32, #tpu.memory_space<vmem>>, vector<16x128xf32>
    tpu.vector_store %arg9[%c0_34, %c0_35], %100 {strides = array<i32>} : memref<16x128xf32, #tpu.memory_space<vmem>>, vector<16x128xf32>,
    return
  }
  func.func @transform_0(%arg0: i32) -> (i32, i32) {
    %c0_i32 = arith.constant 0 : i32
    %c0_i32_0 = arith.constant 0 : i32
    return %arg0, %c0_i32 : i32, i32
  }
  func.func @transform_1(%arg0: i32) -> (i32, i32) {
    %c0_i32 = arith.constant 0 : i32
    %c0_i32_0 = arith.constant 0 : i32
    %c0_i32_1 = arith.constant 0 : i32
    return %c0_i32, %c0_i32_0 : i32, i32
  }
  func.func @transform_2(%arg0: i32) -> (i32, i32) {
    %c0_i32 = arith.constant 0 : i32
    %c0_i32_0 = arith.constant 0 : i32
    %c0_i32_1 = arith.constant 0 : i32
    return %c0_i32, %c0_i32_0 : i32, i32
  }
  func.func @transform_3(%arg0: i32) -> (i32, i32) {
    %c0_i32 = arith.constant 0 : i32
    %c0_i32_0 = arith.constant 0 : i32
    %c0_i32_1 = arith.constant 0 : i32
    return %c0_i32, %c0_i32_0 : i32, i32
  }
  func.func @transform_4(%arg0: i32) -> (i32, i32) {
    %c0_i32 = arith.constant 0 : i32
    %c0_i32_0 = arith.constant 0 : i32
    %c0_i32_1 = arith.constant 0 : i32
    return %c0_i32, %c0_i32_0 : i32, i32
  }
  func.func @transform_5(%arg0: i32) -> (i32, i32) {
    %c0_i32 = arith.constant 0 : i32
    %c0_i32_0 = arith.constant 0 : i32
    %c0_i32_1 = arith.constant 0 : i32
    return %c0_i32, %c0_i32_0 : i32, i32
  }
  func.func @transform_6(%arg0: i32) -> (i32, i32) {
    %c0_i32 = arith.constant 0 : i32
    %c0_i32_0 = arith.constant 0 : i32
    %c0_i32_1 = arith.constant 0 : i32
    return %c0_i32, %c0_i32_0 : i32, i32
  }
  func.func @transform_7(%arg0: i32) -> (i32, i32) {
    %c0_i32 = arith.constant 0 : i32
    %c0_i32_0 = arith.constant 0 : i32
    %c0_i32_1 = arith.constant 0 : i32
    return %c0_i32, %c0_i32_0 : i32, i32
  }
  func.func @transform_8(%arg0: i32) -> (i32, i32) {
    %c0_i32 = arith.constant 0 : i32
    %c0_i32_0 = arith.constant 0 : i32
    return %arg0, %c0_i32 : i32, i32
  }
}

module attributes {stable_mosaic.version = 11 : i64} {
  func.func @clusterer_kernel(%arg0: i32, %arg1: memref<16x16xbf16, #tpu.memory_space<vmem>>, %arg2: memref<16x128xbf16, #tpu.memory_space<vmem>>, %arg3: memref<1x128xf32, #tpu.memory_space<vmem>>, %arg4: memref<128x128xbf16, #tpu.memory_space<vmem>>, %arg5: memref<1x128xf32, #tpu.memory_space<vmem>>, %arg6: memref<128x128xbf16, #tpu.memory_space<vmem>>, %arg7: memref<1x128xf32, #tpu.memory_space<vmem>>, %arg8: memref<128x128xbf16, #tpu.memory_space<vmem>>, %arg9: memref<16x128xf32, #tpu.memory_space<vmem>>) attributes {dimension_semantics = [#tpu.dimension_semantics<parallel>], iteration_bounds = array<i64: 2>, scalar_prefetch = 0 : i64, scratch_operands = 0 : i64, tpu.core_type = #tpu.core_type<tc>, window_params = [{transform_indices = @transform_0, window_bounds = array<i64: 16, 16>}, {pipeline_mode = #tpu.pipeline_mode<synchronous>, transform_indices = @transform_1, window_bounds = array<i64: 16, 128>}, {pipeline_mode = #tpu.pipeline_mode<synchronous>, transform_indices = @transform_2, window_bounds = array<i64: 1, 128>}, {pipeline_mode = #tpu.pipeline_mode<synchronous>, transform_indices = @transform_3, window_bounds = array<i64: 128, 128>}, {pipeline_mode = #tpu.pipeline_mode<synchronous>, transform_indices = @transform_4, window_bounds = array<i64: 1, 128>}, {pipeline_mode = #tpu.pipeline_mode<synchronous>, transform_indices = @transform_5, window_bounds = array<i64: 128, 128>}, {pipeline_mode = #tpu.pipeline_mode<synchronous>, transform_indices = @transform_6, window_bounds = array<i64: 1, 128>}, {pipeline_mode = #tpu.pipeline_mode<synchronous>, transform_indices = @transform_7, window_bounds = array<i64: 128, 128>}, {transform_indices = @transform_8, window_bounds = array<i64: 16, 128>}]} {
    %c0 = arith.constant 0 : index
    %c0_0 = arith.constant 0 : index
    %0 = vector.load %arg1[%c0, %c0_0] : memref<16x16xbf16, #tpu.memory_space<vmem>>, vector<16x16xbf16>
    %c0_1 = arith.constant 0 : index
    %c0_2 = arith.constant 0 : index
    %1 = vector.load %arg2[%c0_1, %c0_2] : memref<16x128xbf16, #tpu.memory_space<vmem>>, vector<16x128xbf16>
    %cst = arith.constant dense<0.000000e+00> : vector<16x128xf32>
    %2 = tpu.matmul %0, %1, %cst {dimension_numbers = #tpu.dot_dimension_numbers<[1], [0], [0], [1], [0, 0, 1, 1], [], []>} : vector<16x16xbf16>, vector<16x128xbf16>, vector<16x128xf32> -> vector<16x128xf32>
    %c0_3 = arith.constant 0 : index
    %c0_4 = arith.constant 0 : index
    %3 = vector.load %arg3[%c0_3, %c0_4] : memref<1x128xf32, #tpu.memory_space<vmem>>, vector<1x128xf32>
    %4 = vector.broadcast %3 : vector<1x128xf32> to vector<16x128xf32>
    %5 = arith.addf %2, %4 : vector<16x128xf32>
    %cst_5 = arith.constant 0.000000e+00 : f32
    %6 = vector.broadcast %cst_5 : f32 to vector<16x128xf32>
    %7 = arith.cmpf ogt, %5, %6 : vector<16x128xf32>
    %cst_6 = arith.constant 0.00999999977 : f32
    %8 = vector.broadcast %cst_6 : f32 to vector<16x128xf32>
    %9 = arith.mulf %8, %5 : vector<16x128xf32>
    %10 = arith.select %7, %5, %9 : vector<16x128xi1>, vector<16x128xf32>
    %11 = arith.truncf %10 : vector<16x128xf32> to vector<16x128xbf16>
    %c0_7 = arith.constant 0 : index
    %c0_8 = arith.constant 0 : index
    %12 = vector.load %arg4[%c0_7, %c0_8] : memref<128x128xbf16, #tpu.memory_space<vmem>>, vector<128x128xbf16>
    %cst_9 = arith.constant dense<0.000000e+00> : vector<16x128xf32>
    %13 = tpu.matmul %11, %12, %cst_9 {dimension_numbers = #tpu.dot_dimension_numbers<[1], [0], [0], [1], [0, 0, 1, 1], [], []>} : vector<16x128xbf16>, vector<128x128xbf16>, vector<16x128xf32> -> vector<16x128xf32>
    %c0_10 = arith.constant 0 : index
    %c0_11 = arith.constant 0 : index
    %14 = vector.load %arg5[%c0_10, %c0_11] : memref<1x128xf32, #tpu.memory_space<vmem>>, vector<1x128xf32>
    %15 = vector.broadcast %14 : vector<1x128xf32> to vector<16x128xf32>
    %16 = arith.addf %13, %15 : vector<16x128xf32>
    %cst_12 = arith.constant 0.000000e+00 : f32
    %17 = vector.broadcast %cst_12 : f32 to vector<16x128xf32>
    %18 = arith.cmpf ogt, %16, %17 : vector<16x128xf32>
    %cst_13 = arith.constant 0.00999999977 : f32
    %19 = vector.broadcast %cst_13 : f32 to vector<16x128xf32>
    %20 = arith.mulf %19, %16 : vector<16x128xf32>
    %21 = arith.select %18, %16, %20 : vector<16x128xi1>, vector<16x128xf32>
    %22 = arith.truncf %21 : vector<16x128xf32> to vector<16x128xbf16>
    %c0_14 = arith.constant 0 : index
    %c0_15 = arith.constant 0 : index
    %23 = vector.load %arg6[%c0_14, %c0_15] : memref<128x128xbf16, #tpu.memory_space<vmem>>, vector<128x128xbf16>
    %cst_16 = arith.constant dense<0.000000e+00> : vector<16x128xf32>
    %24 = tpu.matmul %22, %23, %cst_16 {dimension_numbers = #tpu.dot_dimension_numbers<[1], [0], [0], [1], [0, 0, 1, 1], [], []>} : vector<16x128xbf16>, vector<128x128xbf16>, vector<16x128xf32> -> vector<16x128xf32>
    %c0_17 = arith.constant 0 : index
    %c0_18 = arith.constant 0 : index
    %25 = vector.load %arg7[%c0_17, %c0_18] : memref<1x128xf32, #tpu.memory_space<vmem>>, vector<1x128xf32>
    %26 = vector.broadcast %25 : vector<1x128xf32> to vector<16x128xf32>
    %27 = arith.addf %24, %26 : vector<16x128xf32>
    %28 = tpu.iota {dimensions = array<i32: 1>} : vector<1x128xi32>
    %cst_19 = arith.constant 0.000000e+00 : f32
    %29 = vector.broadcast %cst_19 : f32 to vector<16x128xf32>
    %c0_i32 = arith.constant 0 : i32
    %30 = vector.broadcast %c0_i32 : i32 to vector<1x128xi32>
    %31 = arith.cmpi sge, %28, %30 : vector<1x128xi32>
    %c4_i32 = arith.constant 4 : i32
    %32 = vector.broadcast %c4_i32 : i32 to vector<1x128xi32>
    %33 = arith.cmpi slt, %28, %32 : vector<1x128xi32>
    %34 = arith.andi %31, %33 : vector<1x128xi1>
    %cst_20 = arith.constant -1.000000e+30 : f32
    %35 = vector.shape_cast %34 : vector<1x128xi1> to vector<1x128xi1>
    %36 = vector.broadcast %35 : vector<1x128xi1> to vector<16x128xi1>
    %37 = vector.broadcast %cst_20 : f32 to vector<16x128xf32>
    %38 = arith.select %36, %27, %37 : vector<16x128xi1>, vector<16x128xf32>
    %cst_21 = arith.constant dense<0xFF800000> : vector<16xf32>
    %39 = vector.multi_reduction <maximumf>, %38, %cst_21 [1] : vector<16x128xf32> to vector<16xf32>
    %40 = vector.shape_cast %39 : vector<16xf32> to vector<16x1xf32>
    %41 = vector.shape_cast %34 : vector<1x128xi1> to vector<1x128xi1>
    %42 = vector.broadcast %41 : vector<1x128xi1> to vector<16x128xi1>
    %43 = vector.shape_cast %40 : vector<16x1xf32> to vector<16x1xf32>
    %44 = vector.broadcast %43 : vector<16x1xf32> to vector<16x128xf32>
    %45 = arith.select %42, %44, %29 : vector<16x128xi1>, vector<16x128xf32>
    %c4_i32_22 = arith.constant 4 : i32
    %46 = vector.broadcast %c4_i32_22 : i32 to vector<1x128xi32>
    %47 = arith.cmpi sge, %28, %46 : vector<1x128xi32>
    %c12_i32 = arith.constant 12 : i32
    %48 = vector.broadcast %c12_i32 : i32 to vector<1x128xi32>
    %49 = arith.cmpi slt, %28, %48 : vector<1x128xi32>
    %50 = arith.andi %47, %49 : vector<1x128xi1>
    %cst_23 = arith.constant -1.000000e+30 : f32
    %51 = vector.shape_cast %50 : vector<1x128xi1> to vector<1x128xi1>
    %52 = vector.broadcast %51 : vector<1x128xi1> to vector<16x128xi1>
    %53 = vector.broadcast %cst_23 : f32 to vector<16x128xf32>
    %54 = arith.select %52, %27, %53 : vector<16x128xi1>, vector<16x128xf32>
    %cst_24 = arith.constant dense<0xFF800000> : vector<16xf32>
    %55 = vector.multi_reduction <maximumf>, %54, %cst_24 [1] : vector<16x128xf32> to vector<16xf32>
    %56 = vector.shape_cast %55 : vector<16xf32> to vector<16x1xf32>
    %57 = vector.shape_cast %50 : vector<1x128xi1> to vector<1x128xi1>
    %58 = vector.broadcast %57 : vector<1x128xi1> to vector<16x128xi1>
    %59 = vector.shape_cast %56 : vector<16x1xf32> to vector<16x1xf32>
    %60 = vector.broadcast %59 : vector<16x1xf32> to vector<16x128xf32>
    %61 = arith.select %58, %60, %45 : vector<16x128xi1>, vector<16x128xf32>
    %c12_i32_25 = arith.constant 12 : i32
    %62 = vector.broadcast %c12_i32_25 : i32 to vector<1x128xi32>
    %63 = arith.cmpi sge, %28, %62 : vector<1x128xi32>
    %c16_i32 = arith.constant 16 : i32
    %64 = vector.broadcast %c16_i32 : i32 to vector<1x128xi32>
    %65 = arith.cmpi slt, %28, %64 : vector<1x128xi32>
    %66 = arith.andi %63, %65 : vector<1x128xi1>
    %cst_26 = arith.constant -1.000000e+30 : f32
    %67 = vector.shape_cast %66 : vector<1x128xi1> to vector<1x128xi1>
    %68 = vector.broadcast %67 : vector<1x128xi1> to vector<16x128xi1>
    %69 = vector.broadcast %cst_26 : f32 to vector<16x128xf32>
    %70 = arith.select %68, %27, %69 : vector<16x128xi1>, vector<16x128xf32>
    %cst_27 = arith.constant dense<0xFF800000> : vector<16xf32>
    %71 = vector.multi_reduction <maximumf>, %70, %cst_27 [1] : vector<16x128xf32> to vector<16xf32>
    %72 = vector.shape_cast %71 : vector<16xf32> to vector<16x1xf32>
    %73 = vector.shape_cast %66 : vector<1x128xi1> to vector<1x128xi1>
    %74 = vector.broadcast %73 : vector<1x128xi1> to vector<16x128xi1>
    %75 = vector.shape_cast %72 : vector<16x1xf32> to vector<16x1xf32>
    %76 = vector.broadcast %75 : vector<16x1xf32> to vector<16x128xf32>
    %77 = arith.select %74, %76, %61 : vector<16x128xi1>, vector<16x128xf32>
    %c16_i32_28 = arith.constant 16 : i32
    %78 = vector.broadcast %c16_i32_28 : i32 to vector<1x128xi32>
    %79 = arith.cmpi sge, %28, %78 : vector<1x128xi32>
    %c128_i32 = arith.constant 128 : i32
    %80 = vector.broadcast %c128_i32 : i32 to vector<1x128xi32>
    %81 = arith.cmpi slt, %28, %80 : vector<1x128xi32>
    %82 = arith.andi %79, %81 : vector<1x128xi1>
    %cst_29 = arith.constant -1.000000e+30 : f32
    %83 = vector.shape_cast %82 : vector<1x128xi1> to vector<1x128xi1>
    %84 = vector.broadcast %83 : vector<1x128xi1> to vector<16x128xi1>
    %85 = vector.broadcast %cst_29 : f32 to vector<16x128xf32>
    %86 = arith.select %84, %27, %85 : vector<16x128xi1>, vector<16x128xf32>
    %cst_30 = arith.constant dense<0xFF800000> : vector<16xf32>
    %87 = vector.multi_reduction <maximumf>, %86, %cst_30 [1] : vector<16x128xf32> to vector<16xf32>
    %88 = vector.shape_cast %87 : vector<16xf32> to vector<16x1xf32>
    %89 = vector.shape_cast %82 : vector<1x128xi1> to vector<1x128xi1>
    %90 = vector.broadcast %89 : vector<1x128xi1> to vector<16x128xi1>
    %91 = vector.shape_cast %88 : vector<16x1xf32> to vector<16x1xf32>
    %92 = vector.broadcast %91 : vector<16x1xf32> to vector<16x128xf32>
    %93 = arith.select %90, %92, %77 : vector<16x128xi1>, vector<16x128xf32>
    %94 = arith.subf %27, %93 : vector<16x128xf32>
    %95 = math.exp %94 : vector<16x128xf32>
    %96 = arith.truncf %95 : vector<16x128xf32> to vector<16x128xbf16>
    %c0_31 = arith.constant 0 : index
    %c0_32 = arith.constant 0 : index
    %97 = vector.load %arg8[%c0_31, %c0_32] : memref<128x128xbf16, #tpu.memory_space<vmem>>, vector<128x128xbf16>
    %cst_33 = arith.constant dense<0.000000e+00> : vector<16x128xf32>
    %98 = tpu.matmul %96, %97, %cst_33 {dimension_numbers = #tpu.dot_dimension_numbers<[1], [0], [0], [1], [0, 0, 1, 1], [], []>} : vector<16x128xbf16>, vector<128x128xbf16>, vector<16x128xf32> -> vector<16x128xf32>
    %99 = arith.extf %96 : vector<16x128xbf16> to vector<16x128xf32>
    %100 = arith.divf %99, %98 : vector<16x128xf32>
    %c0_34 = arith.constant 0 : index
    %c0_35 = arith.constant 0 : index
    %101 = vector.load %arg9[%c0_34, %c0_35] : memref<16x128xf32, #tpu.memory_space<vmem>>, vector<16x128xf32>
    tpu.vector_store %arg9[%c0_34, %c0_35], %100 {strides = array<i32>} : memref<16x128xf32, #tpu.memory_space<vmem>>, vector<16x128xf32>,
    return
  }
  func.func @transform_0(%arg0: i32) -> (i32, i32) {
    %c0_i32 = arith.constant 0 : i32
    %c0_i32_0 = arith.constant 0 : i32
    return %arg0, %c0_i32 : i32, i32
  }
  func.func @transform_1(%arg0: i32) -> (i32, i32) {
    %c0_i32 = arith.constant 0 : i32
    %c0_i32_0 = arith.constant 0 : i32
    %c0_i32_1 = arith.constant 0 : i32
    return %c0_i32, %c0_i32_0 : i32, i32
  }
  func.func @transform_2(%arg0: i32) -> (i32, i32) {
    %c0_i32 = arith.constant 0 : i32
    %c0_i32_0 = arith.constant 0 : i32
    %c0_i32_1 = arith.constant 0 : i32
    return %c0_i32, %c0_i32_0 : i32, i32
  }
  func.func @transform_3(%arg0: i32) -> (i32, i32) {
    %c0_i32 = arith.constant 0 : i32
    %c0_i32_0 = arith.constant 0 : i32
    %c0_i32_1 = arith.constant 0 : i32
    return %c0_i32, %c0_i32_0 : i32, i32
  }
  func.func @transform_4(%arg0: i32) -> (i32, i32) {
    %c0_i32 = arith.constant 0 : i32
    %c0_i32_0 = arith.constant 0 : i32
    %c0_i32_1 = arith.constant 0 : i32
    return %c0_i32, %c0_i32_0 : i32, i32
  }
  func.func @transform_5(%arg0: i32) -> (i32, i32) {
    %c0_i32 = arith.constant 0 : i32
    %c0_i32_0 = arith.constant 0 : i32
    %c0_i32_1 = arith.constant 0 : i32
    return %c0_i32, %c0_i32_0 : i32, i32
  }
  func.func @transform_6(%arg0: i32) -> (i32, i32) {
    %c0_i32 = arith.constant 0 : i32
    %c0_i32_0 = arith.constant 0 : i32
    %c0_i32_1 = arith.constant 0 : i32
    return %c0_i32, %c0_i32_0 : i32, i32
  }
  func.func @transform_7(%arg0: i32) -> (i32, i32) {
    %c0_i32 = arith.constant 0 : i32
    %c0_i32_0 = arith.constant 0 : i32
    %c0_i32_1 = arith.constant 0 : i32
    return %c0_i32, %c0_i32_0 : i32, i32
  }
  func.func @transform_8(%arg0: i32) -> (i32, i32) {
    %c0_i32 = arith.constant 0 : i32
    %c0_i32_0 = arith.constant 0 : i32
    return %arg0, %c0_i32 : i32, i32
  }
}

</mosaic_0001>

<llo_original>
// kernel: tpu_custom_call.1
$region0: #{tpu_custom_call.1}
  #allocation0 [shape = 'u32[]', space=smem, size = 0x4, offset = 0x4, fixed_abs, tag = 'smem constant byte address 0x4 - core index']
  #allocation1 [shape = 'u32[144,128]{1,0:T(1,128)}', space=vmem, size = 0x12000, scoped, tag = 'internal scratch']
  %s0 = inlined_call_operand.vmem [shape: bf16[32,16], index: 0, kind: input, shape index: {}]
  %s1 = inlined_call_operand.vmem [shape: bf16[16,128], index: 1, kind: input, shape index: {}]
  %s2 = inlined_call_operand.vmem [shape: f32[1,128], index: 2, kind: input, shape index: {}]
  %s3 = inlined_call_operand.hbm [shape: bf16[128,128], index: 3, kind: input, shape index: {}]
  %s4 = inlined_call_operand.vmem [shape: f32[1,128], index: 4, kind: input, shape index: {}]
  %s5 = inlined_call_operand.hbm [shape: bf16[128,128], index: 5, kind: input, shape index: {}]
  %s6 = inlined_call_operand.vmem [shape: f32[1,128], index: 6, kind: input, shape index: {}]
  %s7 = inlined_call_operand.hbm [shape: bf16[128,128], index: 7, kind: input, shape index: {}]
  %s8 = inlined_call_operand.hbm [shape: f32[32,128], index: 8, kind: output, shape index: {}]
  %s9 = sld [smem:[#allocation0]]
  $region77: #{tpu_custom_call.1} parent=0
    _
  %s11 = ssub.s32 1, %s9
  %s12 = scalar_select 0, %s11, %s9
  $region1: #{tpu_custom_call.1} parent=0
    #allocation2 [shape = 'u8[32768]{0}', space=vmem, size = 0x8000, scoped, tag = 'input window, operand 3, single buffered']
    #allocation3 [shape = 's32[2]{0}', space=sflag, size = 0x8, scoped, tag = 'scoped memory for tpu_custom_call.1']
    #allocation4 [shape = 's32[2]{0}', space=sflag, size = 0x8, scoped, tag = 'scoped memory for tpu_custom_call.1']
    #allocation5 [shape = 'u8[32768]{0}', space=vmem, size = 0x8000, scoped, tag = 'input window, operand 5, single buffered']
    #allocation6 [shape = 's32[1]{0}', space=sflag, size = 0x4, scoped, tag = 'scoped memory for tpu_custom_call.1']
    #allocation7 [shape = 'u8[32768]{0}', space=vmem, size = 0x8000, scoped, tag = 'input window, operand 7, single buffered']
    #allocation8 [shape = 'u8[16384]{0}', space=vmem, size = 0x4000, scoped, tag = 'output window, operand 0']
    %13 = vsyncpa [#allocation3], 0
    %14 = vsyncpa [#allocation6], 0
    %15 = vsyncpa [#allocation4], 0
    %s16 = scalar_lea.sflag [#allocation4], 1
    %17 = vsyncpa %s16, 0
    loop: start=0, step=1, limit=4
    $region2: #{tpu_custom_call.1} parent=1 // loop_pre_header
      _
    $region3: #{tpu_custom_call.1} parent=1 // loop_header
      %s19 = sphi 0, %s23
      %p20 = scmp.ge.s32.totalorder %s19, 4
      %s29 = sphi 0, %s31
      %s32 = sphi 0, %s29
      %s33 = sphi 0, %s32
      %s49 = sphi 0, %s33
      %s53 = sphi 0, %s53
      %s55 = sphi 0, %s53
      %s56 = sphi 0, %s55
      %s70 = sphi 0, %s56
      %s74 = sphi 0, %s74
      %s76 = sphi 0, %s74
      %s77 = sphi 0, %s76
      %s91 = sphi 0, %s77
      %s95 = sphi 0, %s95
      %s97 = sphi 0, %s95
      %s98 = sphi 0, %s97
      %s112 = sphi 0, %s98
      %s116 = sphi 0, %s116
      %s118 = sphi 0, %s116
      %s119 = sphi 0, %s118
      %s133 = sphi 0, %s119
      %s137 = sphi 0, %s137
      %s139 = sphi 0, %s137
      %s140 = sphi 0, %s139
      %s154 = sphi 0, %s140
      %s158 = sphi 0, %s158
      %s160 = sphi 0, %s158
      %s161 = sphi 0, %s160
      %s175 = sphi 0, %s161
      %s179 = sphi 0, %s179
      %s181 = sphi 0, %s179
      %s182 = sphi 0, %s181
      %s196 = sphi 0, %s182
      %s202 = sphi 0, %s204
      %s205 = sphi 0, %s202
      %s206 = sphi 0, %s205
      %s222 = sphi 0, %s206
    $region4: #{tpu_custom_call.1} parent=1 // loop_header_branch
      %22 = sbr.rel (%p20) target = $region8
    $region5: #{tpu_custom_call.1} parent=1 // loop_body
      %s24 = ssub.s32 %s19, 1
      %s25 = ssub.s32 %s19, 2
      %s26 = sadd.s32 %s19, 1
      %s27 = ssub.s32 %s19, %s26
      %p28 = scmp.eq.s32.totalorder %s27, 0
      %s30 = sadd.s32 %s29, 1
      %s31 = scalar_select %p28, %s29, %s30
      %p34 = pneg %p28
      %p35 = scmp.eq.s32.totalorder %s19, 1
      %p36 = por %p34, %p35
      %p37 = scmp.ne.s32.totalorder %s29, %s32
      %p38 = scmp.eq.s32.totalorder %s19, 0
      %p39 = por %p37, %p38
      %p40 = scmp.ne.s32.totalorder %s29, %s32
      %p41 = scmp.eq.s32.totalorder %s24, 1
      %p42 = por %p40, %p41
      %p43 = scmp.ne.s32.totalorder %s32, %s33
      %p44 = scmp.eq.s32.totalorder %s24, 0
      %p45 = por %p43, %p44
      %p46 = scmp.ne.s32.totalorder %s32, %s33
      %p47 = scmp.eq.s32.totalorder %s25, 1
      %p48 = por %p46, %p47
      %p50 = scmp.ne.s32.totalorder %s33, %s49
      %p51 = scmp.eq.s32.totalorder %s25, 0
      %p52 = por %p50, %p51
      %s54 = sadd.s32 %s53, 1
      %p57 = scmp.eq.s32.totalorder %s19, 1
      %p58 = scmp.ne.s32.totalorder %s53, %s55
      %p59 = scmp.eq.s32.totalorder %s19, 0
      %p60 = por %p58, %p59
      %p61 = scmp.ne.s32.totalorder %s53, %s55
      %p62 = scmp.eq.s32.totalorder %s24, 1
      %p63 = por %p61, %p62
      %p64 = scmp.ne.s32.totalorder %s55, %s56
      %p65 = scmp.eq.s32.totalorder %s24, 0
      %p66 = por %p64, %p65
      %p67 = scmp.ne.s32.totalorder %s55, %s56
      %p68 = scmp.eq.s32.totalorder %s25, 1
      %p69 = por %p67, %p68
      %p71 = scmp.ne.s32.totalorder %s56, %s70
      %p72 = scmp.eq.s32.totalorder %s25, 0
      %p73 = por %p71, %p72
      %s75 = sadd.s32 %s74, 1
      %p78 = scmp.eq.s32.totalorder %s19, 1
      %p79 = scmp.ne.s32.totalorder %s74, %s76
      %p80 = scmp.eq.s32.totalorder %s19, 0
      %p81 = por %p79, %p80
      %p82 = scmp.ne.s32.totalorder %s74, %s76
      %p83 = scmp.eq.s32.totalorder %s24, 1
      %p84 = por %p82, %p83
      %p85 = scmp.ne.s32.totalorder %s76, %s77
      %p86 = scmp.eq.s32.totalorder %s24, 0
      %p87 = por %p85, %p86
      %p88 = scmp.ne.s32.totalorder %s76, %s77
      %p89 = scmp.eq.s32.totalorder %s25, 1
      %p90 = por %p88, %p89
      %p92 = scmp.ne.s32.totalorder %s77, %s91
      %p93 = scmp.eq.s32.totalorder %s25, 0
      %p94 = por %p92, %p93
      %s96 = sadd.s32 %s95, 1
      %p99 = scmp.eq.s32.totalorder %s19, 1
      %p100 = scmp.ne.s32.totalorder %s95, %s97
      %p101 = scmp.eq.s32.totalorder %s19, 0
      %p102 = por %p100, %p101
      %p103 = scmp.ne.s32.totalorder %s95, %s97
      %p104 = scmp.eq.s32.totalorder %s24, 1
      %p105 = por %p103, %p104
      %p106 = scmp.ne.s32.totalorder %s97, %s98
      %p107 = scmp.eq.s32.totalorder %s24, 0
      %p108 = por %p106, %p107
      %p109 = scmp.ne.s32.totalorder %s97, %s98
      %p110 = scmp.eq.s32.totalorder %s25, 1
      %p111 = por %p109, %p110
      %p113 = scmp.ne.s32.totalorder %s98, %s112
      %p114 = scmp.eq.s32.totalorder %s25, 0
      %p115 = por %p113, %p114
      %s117 = sadd.s32 %s116, 1
      %p120 = scmp.eq.s32.totalorder %s19, 1
      %p121 = scmp.ne.s32.totalorder %s116, %s118
      %p122 = scmp.eq.s32.totalorder %s19, 0
      %p123 = por %p121, %p122
      %p124 = scmp.ne.s32.totalorder %s116, %s118
      %p125 = scmp.eq.s32.totalorder %s24, 1
      %p126 = por %p124, %p125
      %p127 = scmp.ne.s32.totalorder %s118, %s119
      %p128 = scmp.eq.s32.totalorder %s24, 0
      %p129 = por %p127, %p128
      %p130 = scmp.ne.s32.totalorder %s118, %s119
      %p131 = scmp.eq.s32.totalorder %s25, 1
      %p132 = por %p130, %p131
      %p134 = scmp.ne.s32.totalorder %s119, %s133
      %p135 = scmp.eq.s32.totalorder %s25, 0
      %p136 = por %p134, %p135
      %s138 = sadd.s32 %s137, 1
      %p141 = scmp.eq.s32.totalorder %s19, 1
      %p142 = scmp.ne.s32.totalorder %s137, %s139
      %p143 = scmp.eq.s32.totalorder %s19, 0
      %p144 = por %p142, %p143
      %p145 = scmp.ne.s32.totalorder %s137, %s139
      %p146 = scmp.eq.s32.totalorder %s24, 1
      %p147 = por %p145, %p146
      %p148 = scmp.ne.s32.totalorder %s139, %s140
      %p149 = scmp.eq.s32.totalorder %s24, 0
      %p150 = por %p148, %p149
      %p151 = scmp.ne.s32.totalorder %s139, %s140
      %p152 = scmp.eq.s32.totalorder %s25, 1
      %p153 = por %p151, %p152
      %p155 = scmp.ne.s32.totalorder %s140, %s154
      %p156 = scmp.eq.s32.totalorder %s25, 0
      %p157 = por %p155, %p156
      %s159 = sadd.s32 %s158, 1
      %p162 = scmp.eq.s32.totalorder %s19, 1
      %p163 = scmp.ne.s32.totalorder %s158, %s160
      %p164 = scmp.eq.s32.totalorder %s19, 0
      %p165 = por %p163, %p164
      %p166 = scmp.ne.s32.totalorder %s158, %s160
      %p167 = scmp.eq.s32.totalorder %s24, 1
      %p168 = por %p166, %p167
      %p169 = scmp.ne.s32.totalorder %s160, %s161
      %p170 = scmp.eq.s32.totalorder %s24, 0
      %p171 = por %p169, %p170
      %p172 = scmp.ne.s32.totalorder %s160, %s161
      %p173 = scmp.eq.s32.totalorder %s25, 1
      %p174 = por %p172, %p173
      %p176 = scmp.ne.s32.totalorder %s161, %s175
      %p177 = scmp.eq.s32.totalorder %s25, 0
      %p178 = por %p176, %p177
      %s180 = sadd.s32 %s179, 1
      %p183 = scmp.eq.s32.totalorder %s19, 1
      %p184 = scmp.ne.s32.totalorder %s179, %s181
      %p185 = scmp.eq.s32.totalorder %s19, 0
      %p186 = por %p184, %p185
      %p187 = scmp.ne.s32.totalorder %s179, %s181
      %p188 = scmp.eq.s32.totalorder %s24, 1
      %p189 = por %p187, %p188
      %p190 = scmp.ne.s32.totalorder %s181, %s182
      %p191 = scmp.eq.s32.totalorder %s24, 0
      %p192 = por %p190, %p191
      %p193 = scmp.ne.s32.totalorder %s181, %s182
      %p194 = scmp.eq.s32.totalorder %s25, 1
      %p195 = por %p193, %p194
      %p197 = scmp.ne.s32.totalorder %s182, %s196
      %p198 = scmp.eq.s32.totalorder %s25, 0
      %p199 = por %p197, %p198
      %s200 = ssub.s32 %s19, %s26
      %p201 = scmp.eq.s32.totalorder %s200, 0
      %s203 = sadd.s32 %s202, 1
      %s204 = scalar_select %p201, %s202, %s203
      %p207 = pneg %p201
      %p208 = scmp.eq.s32.totalorder %s19, 1
      %p209 = por %p207, %p208
      %p210 = scmp.ne.s32.totalorder %s202, %s205
      %p211 = scmp.eq.s32.totalorder %s19, 0
      %p212 = por %p210, %p211
      %p213 = scmp.ne.s32.totalorder %s202, %s205
      %p214 = scmp.eq.s32.totalorder %s24, 1
      %p215 = por %p213, %p214
      %p216 = scmp.ne.s32.totalorder %s205, %s206
      %p217 = scmp.eq.s32.totalorder %s24, 0
      %p218 = por %p216, %p217
      %p219 = scmp.ne.s32.totalorder %s205, %s206
      %p220 = scmp.eq.s32.totalorder %s25, 1
      %p221 = por %p219, %p220
      %p223 = scmp.ne.s32.totalorder %s206, %s222
      %p224 = scmp.eq.s32.totalorder %s25, 0
      %p225 = por %p223, %p224
      %p226 = scmp.le.s32.totalorder 1, %s19
      %p227 = scmp.lt.s32.totalorder %s19, 3
      %p228 = pnand %p226, %p227
      %p229 = pneg %p228
      // Predicated region
      $region9: #{tpu_custom_call.1} parent=5 // pred_check
        _
      $region10: #{tpu_custom_call.1} parent=5 // pred_check_branch
        %231 = sbr.rel (%p228) target = $region12
      $region11: #{tpu_custom_call.1} parent=5 // pred_region
        %s232 = ssub.s32 %s19, 1
        // Predicated region
        $region13: #{tpu_custom_call.1} parent=11 // pred_check
          %p233 = pneg %p66
        $region14: #{tpu_custom_call.1} parent=11 // pred_check_branch
          %235 = sbr.rel (%p233) target = $region16
        $region15: #{tpu_custom_call.1} parent=11 // pred_region
          _
        $region16: #{tpu_custom_call.1} parent=11 // pred_fallthru
          _
        // Predicated region
        $region17: #{tpu_custom_call.1} parent=11 // pred_check
          %p236 = pneg %p87
        $region18: #{tpu_custom_call.1} parent=11 // pred_check_branch
          %238 = sbr.rel (%p236) target = $region20
        $region19: #{tpu_custom_call.1} parent=11 // pred_region
          _
        $region20: #{tpu_custom_call.1} parent=11 // pred_fallthru
          _
        // Predicated region
        $region21: #{tpu_custom_call.1} parent=11 // pred_check
          %p239 = pneg %p108
        $region22: #{tpu_custom_call.1} parent=11 // pred_check_branch
          %241 = sbr.rel (%p239) target = $region24
        $region23: #{tpu_custom_call.1} parent=11 // pred_region
          %s243 = ssub.s32 1024, 1024
          %244 = vsyncadd [#allocation3], %s243
          %s245 = sshll.u32 [#allocation2], 4
          %s246 = int_to_ptr.vmem [resolvable:$true] %s245
          %251 = dma.hbm_to_vmem [thread:$0]  %s3, 1024, %s246, [#allocation3], 64, 64, 4
        $region24: #{tpu_custom_call.1} parent=11 // pred_fallthru
          _
        // Predicated region
        $region25: #{tpu_custom_call.1} parent=11 // pred_check
          %p252 = pneg %p129
        $region26: #{tpu_custom_call.1} parent=11 // pred_check_branch
          %254 = sbr.rel (%p252) target = $region28
        $region27: #{tpu_custom_call.1} parent=11 // pred_region
          _
        $region28: #{tpu_custom_call.1} parent=11 // pred_fallthru
          _
        // Predicated region
        $region29: #{tpu_custom_call.1} parent=11 // pred_check
          %p255 = pneg %p150
        $region30: #{tpu_custom_call.1} parent=11 // pred_check_branch
          %257 = sbr.rel (%p255) target = $region32
        $region31: #{tpu_custom_call.1} parent=11 // pred_region
          %s259 = ssub.s32 1024, 1024
          %260 = vsyncadd [#allocation6], %s259
          %s261 = sshll.u32 [#allocation5], 4
          %s262 = int_to_ptr.vmem [resolvable:$true] %s261
          %267 = dma.hbm_to_vmem [thread:$0]  %s5, 1024, %s262, [#allocation6], 64, 64, 4
        $region32: #{tpu_custom_call.1} parent=11 // pred_fallthru
          _
        // Predicated region
        $region33: #{tpu_custom_call.1} parent=11 // pred_check
          %p268 = pneg %p171
        $region34: #{tpu_custom_call.1} parent=11 // pred_check_branch
          %270 = sbr.rel (%p268) target = $region36
        $region35: #{tpu_custom_call.1} parent=11 // pred_region
          _
        $region36: #{tpu_custom_call.1} parent=11 // pred_fallthru
          _
        // Predicated region
        $region37: #{tpu_custom_call.1} parent=11 // pred_check
          %p271 = pneg %p192
        $region38: #{tpu_custom_call.1} parent=11 // pred_check_branch
          %273 = sbr.rel (%p271) target = $region40
        $region39: #{tpu_custom_call.1} parent=11 // pred_region
          %s275 = ssub.s32 1024, 1024
          %276 = vsyncadd [#allocation6], %s275
          %s277 = sshll.u32 [#allocation7], 4
          %s278 = int_to_ptr.vmem [resolvable:$true] %s277
          %283 = dma.hbm_to_vmem [thread:$0]  %s7, 1024, %s278, [#allocation6], 64, 64, 4
        $region40: #{tpu_custom_call.1} parent=11 // pred_fallthru
          _
      $region12: #{tpu_custom_call.1} parent=5 // pred_fallthru
        _
      %p284 = scmp.lt.s32.totalorder %s19, 2
      // Predicated region
      $region41: #{tpu_custom_call.1} parent=5 // pred_check
        %p285 = pneg %p284
      $region42: #{tpu_custom_call.1} parent=5 // pred_check_branch
        %287 = sbr.rel (%p285) target = $region44
      $region43: #{tpu_custom_call.1} parent=5 // pred_region
        // Predicated region
        $region45: #{tpu_custom_call.1} parent=43 // pred_check
          %p288 = pneg %p39
        $region46: #{tpu_custom_call.1} parent=43 // pred_check_branch
          %290 = sbr.rel (%p288) target = $region48
        $region47: #{tpu_custom_call.1} parent=43 // pred_region
          %s291 = smul.u32 2, %s19
          %p292 = scmp.lt.s32.totalorder %s291, 3
          %s293 = scalar_select %p292, %s291, 3
          %s294 = smul.addr %s293, 4
          %s295 = scalar_lea.vmem %s0, %s294
          %s296 = smul.u32 2, %s19
        $region48: #{tpu_custom_call.1} parent=43 // pred_fallthru
          _
      $region44: #{tpu_custom_call.1} parent=5 // pred_fallthru
        _
      %p297 = scmp.le.s32.totalorder 1, %s19
      %p298 = scmp.lt.s32.totalorder %s19, 3
      %p299 = pnand %p297, %p298
      %p300 = pneg %p299
      // Predicated region
      $region49: #{tpu_custom_call.1} parent=5 // pred_check
        _
      $region50: #{tpu_custom_call.1} parent=5 // pred_check_branch
        %302 = sbr.rel (%p299) target = $region52
      $region51: #{tpu_custom_call.1} parent=5 // pred_region
        %s303 = ssub.s32 %s19, 1
        // Predicated region
        $region53: #{tpu_custom_call.1} parent=51 // pred_check
          %p304 = pneg %p108
        $region54: #{tpu_custom_call.1} parent=51 // pred_check_branch
          %306 = sbr.rel (%p304) target = $region56
        $region55: #{tpu_custom_call.1} parent=51 // pred_region
          %307 = dma.done [#allocation3], 1024
        $region56: #{tpu_custom_call.1} parent=51 // pred_fallthru
          _
        // Predicated region
        $region57: #{tpu_custom_call.1} parent=51 // pred_check
          %p308 = pneg %p150
        $region58: #{tpu_custom_call.1} parent=51 // pred_check_branch
          %310 = sbr.rel (%p308) target = $region60
        $region59: #{tpu_custom_call.1} parent=51 // pred_region
          %311 = dma.done [#allocation6], 1024
        $region60: #{tpu_custom_call.1} parent=51 // pred_fallthru
          _
        // Predicated region
        $region61: #{tpu_custom_call.1} parent=51 // pred_check
          %p312 = pneg %p192
        $region62: #{tpu_custom_call.1} parent=51 // pred_check_branch
          %314 = sbr.rel (%p312) target = $region64
        $region63: #{tpu_custom_call.1} parent=51 // pred_region
          %315 = dma.done [#allocation6], 1024
        $region64: #{tpu_custom_call.1} parent=51 // pred_fallthru
          _
        %s316 = smul.u32 2, %s24
        %p317 = scmp.lt.s32.totalorder %s316, 3
        %s318 = scalar_select %p317, %s316, 3
        %s319 = smul.addr %s318, 4
        %s320 = scalar_lea.vmem %s0, %s319
        %p321 = pneg %p45
        %p322 = pneg %p42
        %p323 = pneg %p66
        %p324 = pneg %p63
        %p325 = pneg %p87
        %p326 = pneg %p84
        %p327 = pneg %p108
        %p328 = pneg %p105
        %p329 = pneg %p129
        %p330 = pneg %p126
        %p331 = pneg %p150
        %p332 = pneg %p147
        %p333 = pneg %p171
        %p334 = pneg %p168
        %p335 = pneg %p192
        %p336 = pneg %p189
        %p337 = pneg %p218
        %p338 = pneg %p215
        %s339 = sand.u32 %s205, 1
        %s340 = scalar_lea.sflag [#allocation4], %s339
        %s341 = sand.u32 %s205, 1
        %s342 = smul.addr %s341, 16
        %s343 = scalar_lea.vmem [#allocation8], %s342
        %s344 = smul.u32 2, %s24
        %p345 = scmp.lt.s32.totalorder %s344, 3
        %s346 = scalar_select %p345, %s344, 3
        %s347 = smul.addr %s346, 4
        %s348 = scalar_lea.vmem %s0, %s347
        %s349 = smul.u32 2, %s24
        %s350 = smul.u32 2, %s24
        %v352 = vld [vmem:[%s348] sm:$0xf]
        %v353 = vld [vmem:[%s348 + $0x4] sm:$0xf]
        %v354 = vld [vmem:[%s1] sm:$0xf]
        %v355 = vld [vmem:[%s1 + $0x4] sm:$0xf]
        %v356 = vld [vmem:[%s2] sm:$0x1]
        %v358 = vlaneseq
        %v359 = vshrl.u32 %v358, 7
        %v360 = vsub.s32 0, %v359
        %v361 = vrot.slane %v356, %v360
        %v365 = vunpack.c.l.b16 %v352
        %v366 = vunpack.c.l.b16 %v353
        %v367 = vpack.c.b16 %v366, %v365
        %v370 = vunpack.c.l.b16 %v354
        %v371 = vunpack.c.l.b16 %v355
        %v372 = vpack.c.b16 %v371, %v370
        %vm374 = vcmask 130048
        %v376 = vsel %vm374, %v367, 0
        %378 = vmatprep.subr.bf16.mxu0 0
        %379 = vmatpush1.bf16.msra.mxu0 0
        %380 = vmatprep.subr.bf16.mxu0 0
        %381 = vmatpush1.bf16.msra.mxu0 0
        %382 = vmatprep.subr.bf16.mxu0 0
        %383 = vmatpush1.bf16.msra.mxu0 0
        %384 = vmatprep.subr.bf16.mxu0 0
        %385 = vmatpush1.bf16.msra.mxu0 0
        %386 = vmatprep.subr.bf16.mxu0 0
        %387 = vmatpush1.bf16.msra.mxu0 0
        %388 = vmatprep.subr.bf16.mxu0 0
        %389 = vmatpush1.bf16.msra.mxu0 0
        %390 = vmatprep.subr.bf16.mxu0 0
        %391 = vmatpush1.bf16.msra.mxu0 0
        %392 = vmatprep.subr.bf16.mxu0 0
        %393 = vmatpush1.bf16.msra.mxu0 %v372
        %394 = vmatprep.subr.bf16.mxu0 0
        %395 = vmatpush2.bf16.msra.mxu0 0
        %396 = vmatprep.subr.bf16.mxu0 0
        %397 = vmatpush2.bf16.msra.mxu0 0
        %398 = vmatprep.subr.bf16.mxu0 0
        %399 = vmatpush2.bf16.msra.mxu0 0
        %400 = vmatprep.subr.bf16.mxu0 0
        %401 = vmatpush2.bf16.msra.mxu0 0
        %402 = vmatprep.subr.bf16.mxu0 0
        %403 = vmatpush2.bf16.msra.mxu0 0
        %404 = vmatprep.subr.bf16.mxu0 0
        %405 = vmatpush2.bf16.msra.mxu0 0
        %406 = vmatprep.subr.bf16.mxu0 0
        %407 = vmatpush2.bf16.msra.mxu0 0
        %408 = vmatprep.subr.bf16.mxu0 0
        %409 = vmatpush2.bf16.msra.mxu0 0
        %410 = vmatprep.mubr.bf16.mxu0 0
        %411 = vmatmul.mubr.bf16.gmra.mxu0 %v376
        %v412 = vpop.f32.mrf.mxu0
        %v413 = vadd.f32 %v361, %v412
        %v414 = vpop.f32.mrf.mxu0
        %v415 = vpop.f32.mrf.mxu0
        %v416 = vadd.f32 %v361, %v415
        %v417 = vpop.f32.mrf.mxu0
        %418 = vdwg.mxu0
        %vm419 = vcmp.gt.f32.partialorder %v413, 0.0
        %vm420 = vcmp.gt.f32.partialorder %v416, 0.0
        %v421 = vmul.f32 %v413, 0.01
        %v422 = vmul.f32 %v416, 0.01
        %v423 = vsel %vm419, %v413, %v421
        %v424 = vsel %vm420, %v416, %v422
        %v425 = vpack.c.bf16 %v424, %v423
        %v426 = vld [vmem:[#allocation2] sm:$0xf]
        %v427 = vld [vmem:[#allocation2 + $0x4] sm:$0xf]
        %v428 = vld [vmem:[#allocation2 + $0x8] sm:$0xf]
        %v429 = vld [vmem:[#allocation2 + $0xc] sm:$0xf]
        %v430 = vld [vmem:[#allocation2 + $0x10] sm:$0xf]
        %v431 = vld [vmem:[#allocation2 + $0x14] sm:$0xf]
        %v432 = vld [vmem:[#allocation2 + $0x18] sm:$0xf]
        %v433 = vld [vmem:[#allocation2 + $0x1c] sm:$0xf]
        %v434 = vld [vmem:[#allocation2 + $0x20] sm:$0xf]
        %v435 = vld [vmem:[#allocation2 + $0x24] sm:$0xf]
        %v436 = vld [vmem:[#allocation2 + $0x28] sm:$0xf]
        %v437 = vld [vmem:[#allocation2 + $0x2c] sm:$0xf]
        %v438 = vld [vmem:[#allocation2 + $0x30] sm:$0xf]
        %v439 = vld [vmem:[#allocation2 + $0x34] sm:$0xf]
        %v440 = vld [vmem:[#allocation2 + $0x38] sm:$0xf]
        %v441 = vld [vmem:[#allocation2 + $0x3c] sm:$0xf]
        %v442 = vld [vmem:[%s4] sm:$0x1]
        %v444 = vlaneseq
        %v445 = vshrl.u32 %v444, 7
        %v446 = vsub.s32 0, %v445
        %v447 = vrot.slane %v442, %v446
        %v465 = vunpack.c.l.b16 %v426
        %v466 = vunpack.c.l.b16 %v427
        %v467 = vunpack.c.l.b16 %v428
        %v468 = vunpack.c.l.b16 %v429
        %v469 = vunpack.c.l.b16 %v430
        %v470 = vunpack.c.l.b16 %v431
        %v471 = vunpack.c.l.b16 %v432
        %v472 = vunpack.c.l.b16 %v433
        %v473 = vunpack.c.l.b16 %v434
        %v474 = vunpack.c.l.b16 %v435
        %v475 = vunpack.c.l.b16 %v436
        %v476 = vunpack.c.l.b16 %v437
        %v477 = vunpack.c.l.b16 %v438
        %v478 = vunpack.c.l.b16 %v439
        %v479 = vunpack.c.l.b16 %v440
        %v480 = vunpack.c.l.b16 %v441
        %v481 = vpack.c.b16 %v466, %v465
        %v482 = vpack.c.b16 %v468, %v467
        %v483 = vpack.c.b16 %v470, %v469
        %v484 = vpack.c.b16 %v472, %v471
        %v485 = vpack.c.b16 %v474, %v473
        %v486 = vpack.c.b16 %v476, %v475
        %v487 = vpack.c.b16 %v478, %v477
        %v488 = vpack.c.b16 %v480, %v479
        %497 = vmatprep.subr.bf16.mxu0 0
        %498 = vmatpush1.bf16.msra.mxu0 %v488
        %499 = vmatprep.subr.bf16.mxu0 0
        %500 = vmatpush1.bf16.msra.mxu0 %v487
        %501 = vmatprep.subr.bf16.mxu0 0
        %502 = vmatpush1.bf16.msra.mxu0 %v486
        %503 = vmatprep.subr.bf16.mxu0 0
        %504 = vmatpush1.bf16.msra.mxu0 %v485
        %505 = vmatprep.subr.bf16.mxu0 0
        %506 = vmatpush1.bf16.msra.mxu0 %v484
        %507 = vmatprep.subr.bf16.mxu0 0
        %508 = vmatpush1.bf16.msra.mxu0 %v483
        %509 = vmatprep.subr.bf16.mxu0 0
        %510 = vmatpush1.bf16.msra.mxu0 %v482
        %511 = vmatprep.subr.bf16.mxu0 0
        %512 = vmatpush1.bf16.msra.mxu0 %v481
        %513 = vmatprep.subr.bf16.mxu0 0
        %514 = vmatpush2.bf16.msra.mxu0 0
        %515 = vmatprep.subr.bf16.mxu0 0
        %516 = vmatpush2.bf16.msra.mxu0 0
        %517 = vmatprep.subr.bf16.mxu0 0
        %518 = vmatpush2.bf16.msra.mxu0 0
        %519 = vmatprep.subr.bf16.mxu0 0
        %520 = vmatpush2.bf16.msra.mxu0 0
        %521 = vmatprep.subr.bf16.mxu0 0
        %522 = vmatpush2.bf16.msra.mxu0 0
        %523 = vmatprep.subr.bf16.mxu0 0
        %524 = vmatpush2.bf16.msra.mxu0 0
        %525 = vmatprep.subr.bf16.mxu0 0
        %526 = vmatpush2.bf16.msra.mxu0 0
        %527 = vmatprep.subr.bf16.mxu0 0
        %528 = vmatpush2.bf16.msra.mxu0 0
        %529 = vmatprep.mubr.bf16.mxu0 0
        %530 = vmatmul.mubr.bf16.gmra.mxu0 %v425
        %v531 = vpop.f32.mrf.mxu0
        %v532 = vadd.f32 %v447, %v531
        %v533 = vpop.f32.mrf.mxu0
        %v534 = vpop.f32.mrf.mxu0
        %v535 = vadd.f32 %v447, %v534
        %v536 = vpop.f32.mrf.mxu0
        %537 = vdwg.mxu0
        %vm538 = vcmp.gt.f32.partialorder %v532, 0.0
        %vm539 = vcmp.gt.f32.partialorder %v535, 0.0
        %v540 = vmul.f32 %v532, 0.01
        %v541 = vmul.f32 %v535, 0.01
        %v542 = vsel %vm538, %v532, %v540
        %v543 = vsel %vm539, %v535, %v541
        %v544 = vpack.c.bf16 %v543, %v542
        %v545 = vld [vmem:[#allocation5] sm:$0xf]
        %v546 = vld [vmem:[#allocation5 + $0x4] sm:$0xf]
        %v547 = vld [vmem:[#allocation5 + $0x8] sm:$0xf]
        %v548 = vld [vmem:[#allocation5 + $0xc] sm:$0xf]
        %v549 = vld [vmem:[#allocation5 + $0x10] sm:$0xf]
        %v550 = vld [vmem:[#allocation5 + $0x14] sm:$0xf]
        %v551 = vld [vmem:[#allocation5 + $0x18] sm:$0xf]
        %v552 = vld [vmem:[#allocation5 + $0x1c] sm:$0xf]
        %v553 = vld [vmem:[#allocation5 + $0x20] sm:$0xf]
        %v554 = vld [vmem:[#allocation5 + $0x24] sm:$0xf]
        %v555 = vld [vmem:[#allocation5 + $0x28] sm:$0xf]
        %v556 = vld [vmem:[#allocation5 + $0x2c] sm:$0xf]
        %v557 = vld [vmem:[#allocation5 + $0x30] sm:$0xf]
        %v558 = vld [vmem:[#allocation5 + $0x34] sm:$0xf]
        %v559 = vld [vmem:[#allocation5 + $0x38] sm:$0xf]
        %v560 = vld [vmem:[#allocation5 + $0x3c] sm:$0xf]
        %v561 = vld [vmem:[%s6] sm:$0x1]
        %v563 = vlaneseq
        %v564 = vshrl.u32 %v563, 7
        %v565 = vsub.s32 0, %v564
        %v566 = vrot.slane %v561, %v565
        %v584 = vunpack.c.l.b16 %v545
        %v585 = vunpack.c.l.b16 %v546
        %v586 = vunpack.c.l.b16 %v547
        %v587 = vunpack.c.l.b16 %v548
        %v588 = vunpack.c.l.b16 %v549
        %v589 = vunpack.c.l.b16 %v550
        %v590 = vunpack.c.l.b16 %v551
        %v591 = vunpack.c.l.b16 %v552
        %v592 = vunpack.c.l.b16 %v553
        %v593 = vunpack.c.l.b16 %v554
        %v594 = vunpack.c.l.b16 %v555
        %v595 = vunpack.c.l.b16 %v556
        %v596 = vunpack.c.l.b16 %v557
        %v597 = vunpack.c.l.b16 %v558
        %v598 = vunpack.c.l.b16 %v559
        %v599 = vunpack.c.l.b16 %v560
        %v600 = vpack.c.b16 %v585, %v584
        %v601 = vpack.c.b16 %v587, %v586
        %v602 = vpack.c.b16 %v589, %v588
        %v603 = vpack.c.b16 %v591, %v590
        %v604 = vpack.c.b16 %v593, %v592
        %v605 = vpack.c.b16 %v595, %v594
        %v606 = vpack.c.b16 %v597, %v596
        %v607 = vpack.c.b16 %v599, %v598
        %616 = vmatprep.subr.bf16.mxu0 0
        %617 = vmatpush1.bf16.msra.mxu0 %v607
        %618 = vmatprep.subr.bf16.mxu0 0
        %619 = vmatpush1.bf16.msra.mxu0 %v606
        %620 = vmatprep.subr.bf16.mxu0 0
        %621 = vmatpush1.bf16.msra.mxu0 %v605
        %622 = vmatprep.subr.bf16.mxu0 0
        %623 = vmatpush1.bf16.msra.mxu0 %v604
        %624 = vmatprep.subr.bf16.mxu0 0
        %625 = vmatpush1.bf16.msra.mxu0 %v603
        %626 = vmatprep.subr.bf16.mxu0 0
        %627 = vmatpush1.bf16.msra.mxu0 %v602
        %628 = vmatprep.subr.bf16.mxu0 0
        %629 = vmatpush1.bf16.msra.mxu0 %v601
        %630 = vmatprep.subr.bf16.mxu0 0
        %631 = vmatpush1.bf16.msra.mxu0 %v600
        %632 = vmatprep.subr.bf16.mxu0 0
        %633 = vmatpush2.bf16.msra.mxu0 0
        %634 = vmatprep.subr.bf16.mxu0 0
        %635 = vmatpush2.bf16.msra.mxu0 0
        %636 = vmatprep.subr.bf16.mxu0 0
        %637 = vmatpush2.bf16.msra.mxu0 0
        %638 = vmatprep.subr.bf16.mxu0 0
        %639 = vmatpush2.bf16.msra.mxu0 0
        %640 = vmatprep.subr.bf16.mxu0 0
        %641 = vmatpush2.bf16.msra.mxu0 0
        %642 = vmatprep.subr.bf16.mxu0 0
        %643 = vmatpush2.bf16.msra.mxu0 0
        %644 = vmatprep.subr.bf16.mxu0 0
        %645 = vmatpush2.bf16.msra.mxu0 0
        %646 = vmatprep.subr.bf16.mxu0 0
        %647 = vmatpush2.bf16.msra.mxu0 0
        %648 = vmatprep.mubr.bf16.mxu0 0
        %649 = vmatmul.mubr.bf16.gmra.mxu0 %v544
        %v650 = vpop.f32.mrf.mxu0
        %v651 = vadd.f32 %v566, %v650
        %v652 = vpop.f32.mrf.mxu0
        %v653 = vpop.f32.mrf.mxu0
        %v654 = vadd.f32 %v566, %v653
        %v655 = vpop.f32.mrf.mxu0
        %656 = vdwg.mxu0
        %v657 = vlaneseq
        %v658 = vand.u32 %v657, 127
        %vm659 = vcmp.ge.s32.totalorder %v658, 0
        %vm660 = vcmp.lt.s32.totalorder %v658, 4
        %vm661 = vmand %vm659, %vm660
        %v662 = vsel %vm661, 1, 0
        %vm663 = vcmp.eq.s32.totalorder %v662, 1
        %v664 = vsel %vm663, %v651, -1e+30
        %v665 = vsel %vm663, %v654, -1e+30
        %666 = vmax.xlane.f32.xlu0 %v664
        %v667 = vpop.xlane.xlu0 %666
        %668 = vmax.xlane.f32.xlu0 %v665
        %v669 = vpop.xlane.xlu0 %668
        %v670 = vsel %vm663, %v667, 0.0
        %v671 = vsel %vm663, %v669, 0.0
        %vm672 = vcmp.ge.s32.totalorder %v658, 4
        %vm673 = vcmp.lt.s32.totalorder %v658, 12
        %vm674 = vmand %vm672, %vm673
        %v675 = vsel %vm674, 1, 0
        %vm676 = vcmp.eq.s32.totalorder %v675, 1
        %v677 = vsel %vm676, %v651, -1e+30
        %v678 = vsel %vm676, %v654, -1e+30
        %679 = vmax.xlane.f32.xlu0 %v677
        %v680 = vpop.xlane.xlu0 %679
        %681 = vmax.xlane.f32.xlu0 %v678
        %v682 = vpop.xlane.xlu0 %681
        %v683 = vsel %vm676, %v680, %v670
        %v684 = vsel %vm676, %v682, %v671
        %vm685 = vcmp.ge.s32.totalorder %v658, 12
        %vm686 = vcmp.lt.s32.totalorder %v658, 16
        %vm687 = vmand %vm685, %vm686
        %v688 = vsel %vm687, 1, 0
        %vm689 = vcmp.eq.s32.totalorder %v688, 1
        %v690 = vsel %vm689, %v651, -1e+30
        %v691 = vsel %vm689, %v654, -1e+30
        %692 = vmax.xlane.f32.xlu0 %v690
        %v693 = vpop.xlane.xlu0 %692
        %694 = vmax.xlane.f32.xlu0 %v691
        %v695 = vpop.xlane.xlu0 %694
        %v696 = vsel %vm689, %v693, %v683
        %v697 = vsel %vm689, %v695, %v684
        %vm698 = vcmp.ge.s32.totalorder %v658, 16
        %vm699 = vcmp.lt.s32.totalorder %v658, 128
        %vm700 = vmand %vm698, %vm699
        %v701 = vsel %vm700, 1, 0
        %vm702 = vcmp.eq.s32.totalorder %v701, 1
        %v703 = vsel %vm702, %v651, -1e+30
        %v704 = vsel %vm702, %v654, -1e+30
        %705 = vmax.xlane.f32.xlu0 %v703
        %v706 = vpop.xlane.xlu0 %705
        %707 = vmax.xlane.f32.xlu0 %v704
        %v708 = vpop.xlane.xlu0 %707
        %v709 = vsel %vm702, %v706, %v696
        %v710 = vsel %vm702, %v708, %v697
        %v711 = vsub.f32 %v651, %v709
        %v712 = vsub.f32 %v654, %v710
        %v713 = vmul.f32 %v711, 1.442695
        %v714 = vpow.pop %v713
        %v715 = vmul.f32 %v712, 1.442695
        %v716 = vpow.pop %v715
        %v717 = vpack.c.bf16 %v716, %v714
        %v718 = vld [vmem:[#allocation7] sm:$0xf]
        %v719 = vld [vmem:[#allocation7 + $0x4] sm:$0xf]
        %v720 = vld [vmem:[#allocation7 + $0x8] sm:$0xf]
        %v721 = vld [vmem:[#allocation7 + $0xc] sm:$0xf]
        %v722 = vld [vmem:[#allocation7 + $0x10] sm:$0xf]
        %v723 = vld [vmem:[#allocation7 + $0x14] sm:$0xf]
        %v724 = vld [vmem:[#allocation7 + $0x18] sm:$0xf]
        %v725 = vld [vmem:[#allocation7 + $0x1c] sm:$0xf]
        %v726 = vld [vmem:[#allocation7 + $0x20] sm:$0xf]
        %v727 = vld [vmem:[#allocation7 + $0x24] sm:$0xf]
        %v728 = vld [vmem:[#allocation7 + $0x28] sm:$0xf]
        %v729 = vld [vmem:[#allocation7 + $0x2c] sm:$0xf]
        %v730 = vld [vmem:[#allocation7 + $0x30] sm:$0xf]
        %v731 = vld [vmem:[#allocation7 + $0x34] sm:$0xf]
        %v732 = vld [vmem:[#allocation7 + $0x38] sm:$0xf]
        %v733 = vld [vmem:[#allocation7 + $0x3c] sm:$0xf]
        %v750 = vunpack.c.l.b16 %v718
        %v751 = vunpack.c.l.b16 %v719
        %v752 = vunpack.c.l.b16 %v720
        %v753 = vunpack.c.l.b16 %v721
        %v754 = vunpack.c.l.b16 %v722
        %v755 = vunpack.c.l.b16 %v723
        %v756 = vunpack.c.l.b16 %v724
        %v757 = vunpack.c.l.b16 %v725
        %v758 = vunpack.c.l.b16 %v726
        %v759 = vunpack.c.l.b16 %v727
        %v760 = vunpack.c.l.b16 %v728
        %v761 = vunpack.c.l.b16 %v729
        %v762 = vunpack.c.l.b16 %v730
        %v763 = vunpack.c.l.b16 %v731
        %v764 = vunpack.c.l.b16 %v732
        %v765 = vunpack.c.l.b16 %v733
        %v766 = vpack.c.b16 %v751, %v750
        %v767 = vpack.c.b16 %v753, %v752
        %v768 = vpack.c.b16 %v755, %v754
        %v769 = vpack.c.b16 %v757, %v756
        %v770 = vpack.c.b16 %v759, %v758
        %v771 = vpack.c.b16 %v761, %v760
        %v772 = vpack.c.b16 %v763, %v762
        %v773 = vpack.c.b16 %v765, %v764
        %782 = vmatprep.subr.bf16.mxu0 0
        %783 = vmatpush1.bf16.msra.mxu0 %v773
        %784 = vmatprep.subr.bf16.mxu0 0
        %785 = vmatpush1.bf16.msra.mxu0 %v772
        %786 = vmatprep.subr.bf16.mxu0 0
        %787 = vmatpush1.bf16.msra.mxu0 %v771
        %788 = vmatprep.subr.bf16.mxu0 0
        %789 = vmatpush1.bf16.msra.mxu0 %v770
        %790 = vmatprep.subr.bf16.mxu0 0
        %791 = vmatpush1.bf16.msra.mxu0 %v769
        %792 = vmatprep.subr.bf16.mxu0 0
        %793 = vmatpush1.bf16.msra.mxu0 %v768
        %794 = vmatprep.subr.bf16.mxu0 0
        %795 = vmatpush1.bf16.msra.mxu0 %v767
        %796 = vmatprep.subr.bf16.mxu0 0
        %797 = vmatpush1.bf16.msra.mxu0 %v766
        %798 = vmatprep.subr.bf16.mxu0 0
        %799 = vmatpush2.bf16.msra.mxu0 0
        %800 = vmatprep.subr.bf16.mxu0 0
        %801 = vmatpush2.bf16.msra.mxu0 0
        %802 = vmatprep.subr.bf16.mxu0 0
        %803 = vmatpush2.bf16.msra.mxu0 0
        %804 = vmatprep.subr.bf16.mxu0 0
        %805 = vmatpush2.bf16.msra.mxu0 0
        %806 = vmatprep.subr.bf16.mxu0 0
        %807 = vmatpush2.bf16.msra.mxu0 0
        %808 = vmatprep.subr.bf16.mxu0 0
        %809 = vmatpush2.bf16.msra.mxu0 0
        %810 = vmatprep.subr.bf16.mxu0 0
        %811 = vmatpush2.bf16.msra.mxu0 0
        %812 = vmatprep.subr.bf16.mxu0 0
        %813 = vmatpush2.bf16.msra.mxu0 0
        %814 = vmatprep.mubr.bf16.mxu0 0
        %815 = vmatmul.mubr.bf16.gmra.mxu0 %v717
        %v816 = vpop.f32.mrf.mxu0
        %v817 = vadd.f32 0.0, %v816
        %v818 = vpop.f32.mrf.mxu0
        %v819 = vpop.f32.mrf.mxu0
        %v820 = vadd.f32 0.0, %v819
        %v821 = vpop.f32.mrf.mxu0
        %822 = vdwg.mxu0
        %v823 = vunpack.c.l.bf16 %v717
        %v824 = vunpack.c.h.bf16 %v717
        %v825 = vrcp.pop %v817
        %v826 = vmul.f32 %v823, %v825
        %v827 = vrcp.pop %v820
        %v828 = vmul.f32 %v824, %v827
        %829 = vst [vmem:[%s343] sm:$0xff] %v826
        %830 = vst [vmem:[%s343 + $0x8] sm:$0xff] %v828
        %s831 = sand.u32 %s205, 1
        %s832 = scalar_lea.sflag [#allocation4], %s831
        %s833 = sand.u32 %s205, 1
        %s834 = smul.addr %s833, 16
        %s835 = scalar_lea.vmem [#allocation8], %s834
        // Predicated region
        $region65: #{tpu_custom_call.1} parent=51 // pred_check
          %p836 = pneg %p215
        $region66: #{tpu_custom_call.1} parent=51 // pred_check_branch
          %838 = sbr.rel (%p836) target = $region68
        $region67: #{tpu_custom_call.1} parent=51 // pred_region
          %s839 = smul.u32 2, %s24
          %s841 = ssub.s32 256, 256
          %842 = vsyncadd %s832, %s841
          %s843 = smul.addr %s839, 128
          %s844 = scalar_lea.hbm %s8, %s843
          %s845 = sshll.u32 %s835, 4
          %s846 = int_to_ptr.vmem [resolvable:$true] %s845
          %851 = dma.vmem_to_hbm [thread:$0]  %s846, 256, %s844, %s832, 128, 128, 8
        $region68: #{tpu_custom_call.1} parent=51 // pred_fallthru
          _
      $region52: #{tpu_custom_call.1} parent=5 // pred_fallthru
        _
      %p852 = scmp.le.s32.totalorder 2, %s19
      // Predicated region
      $region69: #{tpu_custom_call.1} parent=5 // pred_check
        %p853 = pneg %p852
      $region70: #{tpu_custom_call.1} parent=5 // pred_check_branch
        %855 = sbr.rel (%p853) target = $region72
      $region71: #{tpu_custom_call.1} parent=5 // pred_region
        %s856 = ssub.s32 %s19, 2
        // Predicated region
        $region73: #{tpu_custom_call.1} parent=71 // pred_check
          %p857 = pneg %p221
        $region74: #{tpu_custom_call.1} parent=71 // pred_check_branch
          %859 = sbr.rel (%p857) target = $region76
        $region75: #{tpu_custom_call.1} parent=71 // pred_region
          %s860 = sand.u32 %s206, 1
          %s861 = scalar_lea.sflag [#allocation4], %s860
          %s862 = sand.u32 %s206, 1
          %s863 = smul.addr %s862, 16
          %s864 = scalar_lea.vmem [#allocation8], %s863
          %865 = dma.done %s861, 256
        $region76: #{tpu_custom_call.1} parent=71 // pred_fallthru
          _
      $region72: #{tpu_custom_call.1} parent=5 // pred_fallthru
        _
    $region6: #{tpu_custom_call.1} parent=1 // loop_footer
      %s23 = sadd.s32 1, %s19
    $region7: #{tpu_custom_call.1} parent=1 // loop_footer_branch
      %18 = sbr.rel target = $region3
    $region8: #{tpu_custom_call.1} parent=1 // loop_exit
      _
    %866 = vsyncpa [#allocation3], 1
    %s867 = scalar_lea.sflag [#allocation3], 1
    %868 = vsyncpa %s867, 1
    %869 = vsyncpa [#allocation6], 1
    %870 = vsyncpa [#allocation4], 1
    %s871 = scalar_lea.sflag [#allocation4], 1
    %872 = vsyncpa %s871, 1

// kernel: tpu_custom_call.1
$region0: #{tpu_custom_call.1}
  #allocation0 [shape = 'u32[]', space=smem, size = 0x4, offset = 0x4, fixed_abs, tag = 'smem constant byte address 0x4 - core index']
  #allocation1 [shape = 'u32[144,128]{1,0:T(1,128)}', space=vmem, size = 0x12000, scoped, tag = 'internal scratch']
  %s0 = inlined_call_operand.vmem [shape: bf16[32,16], index: 0, kind: input, shape index: {}]
  %s1 = inlined_call_operand.vmem [shape: bf16[16,128], index: 1, kind: input, shape index: {}]
  %s2 = inlined_call_operand.vmem [shape: f32[1,128], index: 2, kind: input, shape index: {}]
  %s3 = inlined_call_operand.hbm [shape: bf16[128,128], index: 3, kind: input, shape index: {}]
  %s4 = inlined_call_operand.vmem [shape: f32[1,128], index: 4, kind: input, shape index: {}]
  %s5 = inlined_call_operand.hbm [shape: bf16[128,128], index: 5, kind: input, shape index: {}]
  %s6 = inlined_call_operand.vmem [shape: f32[1,128], index: 6, kind: input, shape index: {}]
  %s7 = inlined_call_operand.hbm [shape: bf16[128,128], index: 7, kind: input, shape index: {}]
  %s8 = inlined_call_operand.hbm [shape: f32[32,128], index: 8, kind: output, shape index: {}]
  %s9 = sld [smem:[#allocation0]]
  $region77: #{tpu_custom_call.1} parent=0
    _
  %s11 = ssub.s32 1, %s9
  %s12 = scalar_select 0, %s11, %s9
  $region1: #{tpu_custom_call.1} parent=0
    #allocation2 [shape = 'u8[32768]{0}', space=vmem, size = 0x8000, scoped, tag = 'input window, operand 3, single buffered']
    #allocation3 [shape = 's32[2]{0}', space=sflag, size = 0x8, scoped, tag = 'scoped memory for tpu_custom_call.1']
    #allocation4 [shape = 's32[2]{0}', space=sflag, size = 0x8, scoped, tag = 'scoped memory for tpu_custom_call.1']
    #allocation5 [shape = 'u8[32768]{0}', space=vmem, size = 0x8000, scoped, tag = 'input window, operand 5, single buffered']
    #allocation6 [shape = 's32[1]{0}', space=sflag, size = 0x4, scoped, tag = 'scoped memory for tpu_custom_call.1']
    #allocation7 [shape = 'u8[32768]{0}', space=vmem, size = 0x8000, scoped, tag = 'input window, operand 7, single buffered']
    #allocation8 [shape = 'u8[16384]{0}', space=vmem, size = 0x4000, scoped, tag = 'output window, operand 0']
    %13 = vsyncpa [#allocation3], 0
    %14 = vsyncpa [#allocation6], 0
    %15 = vsyncpa [#allocation4], 0
    %s16 = scalar_lea.sflag [#allocation4], 1
    %17 = vsyncpa %s16, 0
    loop: start=0, step=1, limit=4
    $region2: #{tpu_custom_call.1} parent=1 // loop_pre_header
      _
    $region3: #{tpu_custom_call.1} parent=1 // loop_header
      %s19 = sphi 0, %s23
      %p20 = scmp.ge.s32.totalorder %s19, 4
      %s29 = sphi 0, %s31
      %s32 = sphi 0, %s29
      %s33 = sphi 0, %s32
      %s49 = sphi 0, %s33
      %s53 = sphi 0, %s53
      %s55 = sphi 0, %s53
      %s56 = sphi 0, %s55
      %s70 = sphi 0, %s56
      %s74 = sphi 0, %s74
      %s76 = sphi 0, %s74
      %s77 = sphi 0, %s76
      %s91 = sphi 0, %s77
      %s95 = sphi 0, %s95
      %s97 = sphi 0, %s95
      %s98 = sphi 0, %s97
      %s112 = sphi 0, %s98
      %s116 = sphi 0, %s116
      %s118 = sphi 0, %s116
      %s119 = sphi 0, %s118
      %s133 = sphi 0, %s119
      %s137 = sphi 0, %s137
      %s139 = sphi 0, %s137
      %s140 = sphi 0, %s139
      %s154 = sphi 0, %s140
      %s158 = sphi 0, %s158
      %s160 = sphi 0, %s158
      %s161 = sphi 0, %s160
      %s175 = sphi 0, %s161
      %s179 = sphi 0, %s179
      %s181 = sphi 0, %s179
      %s182 = sphi 0, %s181
      %s196 = sphi 0, %s182
      %s202 = sphi 0, %s204
      %s205 = sphi 0, %s202
      %s206 = sphi 0, %s205
      %s222 = sphi 0, %s206
    $region4: #{tpu_custom_call.1} parent=1 // loop_header_branch
      %22 = sbr.rel (%p20) target = $region8
    $region5: #{tpu_custom_call.1} parent=1 // loop_body
      %s24 = ssub.s32 %s19, 1
      %s25 = ssub.s32 %s19, 2
      %s26 = sadd.s32 %s19, 1
      %s27 = ssub.s32 %s19, %s26
      %p28 = scmp.eq.s32.totalorder %s27, 0
      %s30 = sadd.s32 %s29, 1
      %s31 = scalar_select %p28, %s29, %s30
      %p34 = pneg %p28
      %p35 = scmp.eq.s32.totalorder %s19, 1
      %p36 = por %p34, %p35
      %p37 = scmp.ne.s32.totalorder %s29, %s32
      %p38 = scmp.eq.s32.totalorder %s19, 0
      %p39 = por %p37, %p38
      %p40 = scmp.ne.s32.totalorder %s29, %s32
      %p41 = scmp.eq.s32.totalorder %s24, 1
      %p42 = por %p40, %p41
      %p43 = scmp.ne.s32.totalorder %s32, %s33
      %p44 = scmp.eq.s32.totalorder %s24, 0
      %p45 = por %p43, %p44
      %p46 = scmp.ne.s32.totalorder %s32, %s33
      %p47 = scmp.eq.s32.totalorder %s25, 1
      %p48 = por %p46, %p47
      %p50 = scmp.ne.s32.totalorder %s33, %s49
      %p51 = scmp.eq.s32.totalorder %s25, 0
      %p52 = por %p50, %p51
      %s54 = sadd.s32 %s53, 1
      %p57 = scmp.eq.s32.totalorder %s19, 1
      %p58 = scmp.ne.s32.totalorder %s53, %s55
      %p59 = scmp.eq.s32.totalorder %s19, 0
      %p60 = por %p58, %p59
      %p61 = scmp.ne.s32.totalorder %s53, %s55
      %p62 = scmp.eq.s32.totalorder %s24, 1
      %p63 = por %p61, %p62
      %p64 = scmp.ne.s32.totalorder %s55, %s56
      %p65 = scmp.eq.s32.totalorder %s24, 0
      %p66 = por %p64, %p65
      %p67 = scmp.ne.s32.totalorder %s55, %s56
      %p68 = scmp.eq.s32.totalorder %s25, 1
      %p69 = por %p67, %p68
      %p71 = scmp.ne.s32.totalorder %s56, %s70
      %p72 = scmp.eq.s32.totalorder %s25, 0
      %p73 = por %p71, %p72
      %s75 = sadd.s32 %s74, 1
      %p78 = scmp.eq.s32.totalorder %s19, 1
      %p79 = scmp.ne.s32.totalorder %s74, %s76
      %p80 = scmp.eq.s32.totalorder %s19, 0
      %p81 = por %p79, %p80
      %p82 = scmp.ne.s32.totalorder %s74, %s76
      %p83 = scmp.eq.s32.totalorder %s24, 1
      %p84 = por %p82, %p83
      %p85 = scmp.ne.s32.totalorder %s76, %s77
      %p86 = scmp.eq.s32.totalorder %s24, 0
      %p87 = por %p85, %p86
      %p88 = scmp.ne.s32.totalorder %s76, %s77
      %p89 = scmp.eq.s32.totalorder %s25, 1
      %p90 = por %p88, %p89
      %p92 = scmp.ne.s32.totalorder %s77, %s91
      %p93 = scmp.eq.s32.totalorder %s25, 0
      %p94 = por %p92, %p93
      %s96 = sadd.s32 %s95, 1
      %p99 = scmp.eq.s32.totalorder %s19, 1
      %p100 = scmp.ne.s32.totalorder %s95, %s97
      %p101 = scmp.eq.s32.totalorder %s19, 0
      %p102 = por %p100, %p101
      %p103 = scmp.ne.s32.totalorder %s95, %s97
      %p104 = scmp.eq.s32.totalorder %s24, 1
      %p105 = por %p103, %p104
      %p106 = scmp.ne.s32.totalorder %s97, %s98
      %p107 = scmp.eq.s32.totalorder %s24, 0
      %p108 = por %p106, %p107
      %p109 = scmp.ne.s32.totalorder %s97, %s98
      %p110 = scmp.eq.s32.totalorder %s25, 1
      %p111 = por %p109, %p110
      %p113 = scmp.ne.s32.totalorder %s98, %s112
      %p114 = scmp.eq.s32.totalorder %s25, 0
      %p115 = por %p113, %p114
      %s117 = sadd.s32 %s116, 1
      %p120 = scmp.eq.s32.totalorder %s19, 1
      %p121 = scmp.ne.s32.totalorder %s116, %s118
      %p122 = scmp.eq.s32.totalorder %s19, 0
      %p123 = por %p121, %p122
      %p124 = scmp.ne.s32.totalorder %s116, %s118
      %p125 = scmp.eq.s32.totalorder %s24, 1
      %p126 = por %p124, %p125
      %p127 = scmp.ne.s32.totalorder %s118, %s119
      %p128 = scmp.eq.s32.totalorder %s24, 0
      %p129 = por %p127, %p128
      %p130 = scmp.ne.s32.totalorder %s118, %s119
      %p131 = scmp.eq.s32.totalorder %s25, 1
      %p132 = por %p130, %p131
      %p134 = scmp.ne.s32.totalorder %s119, %s133
      %p135 = scmp.eq.s32.totalorder %s25, 0
      %p136 = por %p134, %p135
      %s138 = sadd.s32 %s137, 1
      %p141 = scmp.eq.s32.totalorder %s19, 1
      %p142 = scmp.ne.s32.totalorder %s137, %s139
      %p143 = scmp.eq.s32.totalorder %s19, 0
      %p144 = por %p142, %p143
      %p145 = scmp.ne.s32.totalorder %s137, %s139
      %p146 = scmp.eq.s32.totalorder %s24, 1
      %p147 = por %p145, %p146
      %p148 = scmp.ne.s32.totalorder %s139, %s140
      %p149 = scmp.eq.s32.totalorder %s24, 0
      %p150 = por %p148, %p149
      %p151 = scmp.ne.s32.totalorder %s139, %s140
      %p152 = scmp.eq.s32.totalorder %s25, 1
      %p153 = por %p151, %p152
      %p155 = scmp.ne.s32.totalorder %s140, %s154
      %p156 = scmp.eq.s32.totalorder %s25, 0
      %p157 = por %p155, %p156
      %s159 = sadd.s32 %s158, 1
      %p162 = scmp.eq.s32.totalorder %s19, 1
      %p163 = scmp.ne.s32.totalorder %s158, %s160
      %p164 = scmp.eq.s32.totalorder %s19, 0
      %p165 = por %p163, %p164
      %p166 = scmp.ne.s32.totalorder %s158, %s160
      %p167 = scmp.eq.s32.totalorder %s24, 1
      %p168 = por %p166, %p167
      %p169 = scmp.ne.s32.totalorder %s160, %s161
      %p170 = scmp.eq.s32.totalorder %s24, 0
      %p171 = por %p169, %p170
      %p172 = scmp.ne.s32.totalorder %s160, %s161
      %p173 = scmp.eq.s32.totalorder %s25, 1
      %p174 = por %p172, %p173
      %p176 = scmp.ne.s32.totalorder %s161, %s175
      %p177 = scmp.eq.s32.totalorder %s25, 0
      %p178 = por %p176, %p177
      %s180 = sadd.s32 %s179, 1
      %p183 = scmp.eq.s32.totalorder %s19, 1
      %p184 = scmp.ne.s32.totalorder %s179, %s181
      %p185 = scmp.eq.s32.totalorder %s19, 0
      %p186 = por %p184, %p185
      %p187 = scmp.ne.s32.totalorder %s179, %s181
      %p188 = scmp.eq.s32.totalorder %s24, 1
      %p189 = por %p187, %p188
      %p190 = scmp.ne.s32.totalorder %s181, %s182
      %p191 = scmp.eq.s32.totalorder %s24, 0
      %p192 = por %p190, %p191
      %p193 = scmp.ne.s32.totalorder %s181, %s182
      %p194 = scmp.eq.s32.totalorder %s25, 1
      %p195 = por %p193, %p194
      %p197 = scmp.ne.s32.totalorder %s182, %s196
      %p198 = scmp.eq.s32.totalorder %s25, 0
      %p199 = por %p197, %p198
      %s200 = ssub.s32 %s19, %s26
      %p201 = scmp.eq.s32.totalorder %s200, 0
      %s203 = sadd.s32 %s202, 1
      %s204 = scalar_select %p201, %s202, %s203
      %p207 = pneg %p201
      %p208 = scmp.eq.s32.totalorder %s19, 1
      %p209 = por %p207, %p208
      %p210 = scmp.ne.s32.totalorder %s202, %s205
      %p211 = scmp.eq.s32.totalorder %s19, 0
      %p212 = por %p210, %p211
      %p213 = scmp.ne.s32.totalorder %s202, %s205
      %p214 = scmp.eq.s32.totalorder %s24, 1
      %p215 = por %p213, %p214
      %p216 = scmp.ne.s32.totalorder %s205, %s206
      %p217 = scmp.eq.s32.totalorder %s24, 0
      %p218 = por %p216, %p217
      %p219 = scmp.ne.s32.totalorder %s205, %s206
      %p220 = scmp.eq.s32.totalorder %s25, 1
      %p221 = por %p219, %p220
      %p223 = scmp.ne.s32.totalorder %s206, %s222
      %p224 = scmp.eq.s32.totalorder %s25, 0
      %p225 = por %p223, %p224
      %p226 = scmp.le.s32.totalorder 1, %s19
      %p227 = scmp.lt.s32.totalorder %s19, 3
      %p228 = pnand %p226, %p227
      %p229 = pneg %p228
      // Predicated region
      $region9: #{tpu_custom_call.1} parent=5 // pred_check
        _
      $region10: #{tpu_custom_call.1} parent=5 // pred_check_branch
        %231 = sbr.rel (%p228) target = $region12
      $region11: #{tpu_custom_call.1} parent=5 // pred_region
        %s232 = ssub.s32 %s19, 1
        // Predicated region
        $region13: #{tpu_custom_call.1} parent=11 // pred_check
          %p233 = pneg %p66
        $region14: #{tpu_custom_call.1} parent=11 // pred_check_branch
          %235 = sbr.rel (%p233) target = $region16
        $region15: #{tpu_custom_call.1} parent=11 // pred_region
          _
        $region16: #{tpu_custom_call.1} parent=11 // pred_fallthru
          _
        // Predicated region
        $region17: #{tpu_custom_call.1} parent=11 // pred_check
          %p236 = pneg %p87
        $region18: #{tpu_custom_call.1} parent=11 // pred_check_branch
          %238 = sbr.rel (%p236) target = $region20
        $region19: #{tpu_custom_call.1} parent=11 // pred_region
          _
        $region20: #{tpu_custom_call.1} parent=11 // pred_fallthru
          _
        // Predicated region
        $region21: #{tpu_custom_call.1} parent=11 // pred_check
          %p239 = pneg %p108
        $region22: #{tpu_custom_call.1} parent=11 // pred_check_branch
          %241 = sbr.rel (%p239) target = $region24
        $region23: #{tpu_custom_call.1} parent=11 // pred_region
          %s243 = ssub.s32 1024, 1024
          %244 = vsyncadd [#allocation3], %s243
          %s245 = sshll.u32 [#allocation2], 4
          %s246 = int_to_ptr.vmem [resolvable:$true] %s245
          %251 = dma.hbm_to_vmem [thread:$0]  %s3, 1024, %s246, [#allocation3], 64, 64, 4
        $region24: #{tpu_custom_call.1} parent=11 // pred_fallthru
          _
        // Predicated region
        $region25: #{tpu_custom_call.1} parent=11 // pred_check
          %p252 = pneg %p129
        $region26: #{tpu_custom_call.1} parent=11 // pred_check_branch
          %254 = sbr.rel (%p252) target = $region28
        $region27: #{tpu_custom_call.1} parent=11 // pred_region
          _
        $region28: #{tpu_custom_call.1} parent=11 // pred_fallthru
          _
        // Predicated region
        $region29: #{tpu_custom_call.1} parent=11 // pred_check
          %p255 = pneg %p150
        $region30: #{tpu_custom_call.1} parent=11 // pred_check_branch
          %257 = sbr.rel (%p255) target = $region32
        $region31: #{tpu_custom_call.1} parent=11 // pred_region
          %s259 = ssub.s32 1024, 1024
          %260 = vsyncadd [#allocation6], %s259
          %s261 = sshll.u32 [#allocation5], 4
          %s262 = int_to_ptr.vmem [resolvable:$true] %s261
          %267 = dma.hbm_to_vmem [thread:$0]  %s5, 1024, %s262, [#allocation6], 64, 64, 4
        $region32: #{tpu_custom_call.1} parent=11 // pred_fallthru
          _
        // Predicated region
        $region33: #{tpu_custom_call.1} parent=11 // pred_check
          %p268 = pneg %p171
        $region34: #{tpu_custom_call.1} parent=11 // pred_check_branch
          %270 = sbr.rel (%p268) target = $region36
        $region35: #{tpu_custom_call.1} parent=11 // pred_region
          _
        $region36: #{tpu_custom_call.1} parent=11 // pred_fallthru
          _
        // Predicated region
        $region37: #{tpu_custom_call.1} parent=11 // pred_check
          %p271 = pneg %p192
        $region38: #{tpu_custom_call.1} parent=11 // pred_check_branch
          %273 = sbr.rel (%p271) target = $region40
        $region39: #{tpu_custom_call.1} parent=11 // pred_region
          %s275 = ssub.s32 1024, 1024
          %276 = vsyncadd [#allocation6], %s275
          %s277 = sshll.u32 [#allocation7], 4
          %s278 = int_to_ptr.vmem [resolvable:$true] %s277
          %283 = dma.hbm_to_vmem [thread:$0]  %s7, 1024, %s278, [#allocation6], 64, 64, 4
        $region40: #{tpu_custom_call.1} parent=11 // pred_fallthru
          _
      $region12: #{tpu_custom_call.1} parent=5 // pred_fallthru
        _
      %p284 = scmp.lt.s32.totalorder %s19, 2
      // Predicated region
      $region41: #{tpu_custom_call.1} parent=5 // pred_check
        %p285 = pneg %p284
      $region42: #{tpu_custom_call.1} parent=5 // pred_check_branch
        %287 = sbr.rel (%p285) target = $region44
      $region43: #{tpu_custom_call.1} parent=5 // pred_region
        // Predicated region
        $region45: #{tpu_custom_call.1} parent=43 // pred_check
          %p288 = pneg %p39
        $region46: #{tpu_custom_call.1} parent=43 // pred_check_branch
          %290 = sbr.rel (%p288) target = $region48
        $region47: #{tpu_custom_call.1} parent=43 // pred_region
          %s291 = smul.u32 2, %s19
          %p292 = scmp.lt.s32.totalorder %s291, 3
          %s293 = scalar_select %p292, %s291, 3
          %s294 = smul.addr %s293, 4
          %s295 = scalar_lea.vmem %s0, %s294
          %s296 = smul.u32 2, %s19
        $region48: #{tpu_custom_call.1} parent=43 // pred_fallthru
          _
      $region44: #{tpu_custom_call.1} parent=5 // pred_fallthru
        _
      %p297 = scmp.le.s32.totalorder 1, %s19
      %p298 = scmp.lt.s32.totalorder %s19, 3
      %p299 = pnand %p297, %p298
      %p300 = pneg %p299
      // Predicated region
      $region49: #{tpu_custom_call.1} parent=5 // pred_check
        _
      $region50: #{tpu_custom_call.1} parent=5 // pred_check_branch
        %302 = sbr.rel (%p299) target = $region52
      $region51: #{tpu_custom_call.1} parent=5 // pred_region
        %s303 = ssub.s32 %s19, 1
        // Predicated region
        $region53: #{tpu_custom_call.1} parent=51 // pred_check
          %p304 = pneg %p108
        $region54: #{tpu_custom_call.1} parent=51 // pred_check_branch
          %306 = sbr.rel (%p304) target = $region56
        $region55: #{tpu_custom_call.1} parent=51 // pred_region
          %307 = dma.done [#allocation3], 1024
        $region56: #{tpu_custom_call.1} parent=51 // pred_fallthru
          _
        // Predicated region
        $region57: #{tpu_custom_call.1} parent=51 // pred_check
          %p308 = pneg %p150
        $region58: #{tpu_custom_call.1} parent=51 // pred_check_branch
          %310 = sbr.rel (%p308) target = $region60
        $region59: #{tpu_custom_call.1} parent=51 // pred_region
          %311 = dma.done [#allocation6], 1024
        $region60: #{tpu_custom_call.1} parent=51 // pred_fallthru
          _
        // Predicated region
        $region61: #{tpu_custom_call.1} parent=51 // pred_check
          %p312 = pneg %p192
        $region62: #{tpu_custom_call.1} parent=51 // pred_check_branch
          %314 = sbr.rel (%p312) target = $region64
        $region63: #{tpu_custom_call.1} parent=51 // pred_region
          %315 = dma.done [#allocation6], 1024
        $region64: #{tpu_custom_call.1} parent=51 // pred_fallthru
          _
        %s316 = smul.u32 2, %s24
        %p317 = scmp.lt.s32.totalorder %s316, 3
        %s318 = scalar_select %p317, %s316, 3
        %s319 = smul.addr %s318, 4
        %s320 = scalar_lea.vmem %s0, %s319
        %p321 = pneg %p45
        %p322 = pneg %p42
        %p323 = pneg %p66
        %p324 = pneg %p63
        %p325 = pneg %p87
        %p326 = pneg %p84
        %p327 = pneg %p108
        %p328 = pneg %p105
        %p329 = pneg %p129
        %p330 = pneg %p126
        %p331 = pneg %p150
        %p332 = pneg %p147
        %p333 = pneg %p171
        %p334 = pneg %p168
        %p335 = pneg %p192
        %p336 = pneg %p189
        %p337 = pneg %p218
        %p338 = pneg %p215
        %s339 = sand.u32 %s205, 1
        %s340 = scalar_lea.sflag [#allocation4], %s339
        %s341 = sand.u32 %s205, 1
        %s342 = smul.addr %s341, 16
        %s343 = scalar_lea.vmem [#allocation8], %s342
        %s344 = smul.u32 2, %s24
        %p345 = scmp.lt.s32.totalorder %s344, 3
        %s346 = scalar_select %p345, %s344, 3
        %s347 = smul.addr %s346, 4
        %s348 = scalar_lea.vmem %s0, %s347
        %s349 = smul.u32 2, %s24
        %s350 = smul.u32 2, %s24
        %v352 = vld [vmem:[%s348] sm:$0xf]
        %v353 = vld [vmem:[%s348 + $0x4] sm:$0xf]
        %v354 = vld [vmem:[%s1] sm:$0xf]
        %v355 = vld [vmem:[%s1 + $0x4] sm:$0xf]
        %v356 = vld [vmem:[%s2] sm:$0x1]
        %v358 = vlaneseq
        %v359 = vshrl.u32 %v358, 7
        %v360 = vsub.s32 0, %v359
        %v361 = vrot.slane %v356, %v360
        %v365 = vunpack.c.l.b16 %v352
        %v366 = vunpack.c.l.b16 %v353
        %v367 = vpack.c.b16 %v366, %v365
        %v370 = vunpack.c.l.b16 %v354
        %v371 = vunpack.c.l.b16 %v355
        %v372 = vpack.c.b16 %v371, %v370
        %vm374 = vcmask 130048
        %v376 = vsel %vm374, %v367, 0
        %378 = vmatprep.subr.bf16.mxu0 0
        %379 = vmatpush1.bf16.msra.mxu0 0
        %380 = vmatprep.subr.bf16.mxu0 0
        %381 = vmatpush1.bf16.msra.mxu0 0
        %382 = vmatprep.subr.bf16.mxu0 0
        %383 = vmatpush1.bf16.msra.mxu0 0
        %384 = vmatprep.subr.bf16.mxu0 0
        %385 = vmatpush1.bf16.msra.mxu0 0
        %386 = vmatprep.subr.bf16.mxu0 0
        %387 = vmatpush1.bf16.msra.mxu0 0
        %388 = vmatprep.subr.bf16.mxu0 0
        %389 = vmatpush1.bf16.msra.mxu0 0
        %390 = vmatprep.subr.bf16.mxu0 0
        %391 = vmatpush1.bf16.msra.mxu0 0
        %392 = vmatprep.subr.bf16.mxu0 0
        %393 = vmatpush1.bf16.msra.mxu0 %v372
        %394 = vmatprep.subr.bf16.mxu0 0
        %395 = vmatpush2.bf16.msra.mxu0 0
        %396 = vmatprep.subr.bf16.mxu0 0
        %397 = vmatpush2.bf16.msra.mxu0 0
        %398 = vmatprep.subr.bf16.mxu0 0
        %399 = vmatpush2.bf16.msra.mxu0 0
        %400 = vmatprep.subr.bf16.mxu0 0
        %401 = vmatpush2.bf16.msra.mxu0 0
        %402 = vmatprep.subr.bf16.mxu0 0
        %403 = vmatpush2.bf16.msra.mxu0 0
        %404 = vmatprep.subr.bf16.mxu0 0
        %405 = vmatpush2.bf16.msra.mxu0 0
        %406 = vmatprep.subr.bf16.mxu0 0
        %407 = vmatpush2.bf16.msra.mxu0 0
        %408 = vmatprep.subr.bf16.mxu0 0
        %409 = vmatpush2.bf16.msra.mxu0 0
        %410 = vmatprep.mubr.bf16.mxu0 0
        %411 = vmatmul.mubr.bf16.gmra.mxu0 %v376
        %v412 = vpop.f32.mrf.mxu0
        %v413 = vadd.f32 %v361, %v412
        %v414 = vpop.f32.mrf.mxu0
        %v415 = vpop.f32.mrf.mxu0
        %v416 = vadd.f32 %v361, %v415
        %v417 = vpop.f32.mrf.mxu0
        %418 = vdwg.mxu0
        %vm419 = vcmp.gt.f32.partialorder %v413, 0.0
        %vm420 = vcmp.gt.f32.partialorder %v416, 0.0
        %v421 = vmul.f32 %v413, 0.01
        %v422 = vmul.f32 %v416, 0.01
        %v423 = vsel %vm419, %v413, %v421
        %v424 = vsel %vm420, %v416, %v422
        %v425 = vpack.c.bf16 %v424, %v423
        %v426 = vld [vmem:[#allocation2] sm:$0xf]
        %v427 = vld [vmem:[#allocation2 + $0x4] sm:$0xf]
        %v428 = vld [vmem:[#allocation2 + $0x8] sm:$0xf]
        %v429 = vld [vmem:[#allocation2 + $0xc] sm:$0xf]
        %v430 = vld [vmem:[#allocation2 + $0x10] sm:$0xf]
        %v431 = vld [vmem:[#allocation2 + $0x14] sm:$0xf]
        %v432 = vld [vmem:[#allocation2 + $0x18] sm:$0xf]
        %v433 = vld [vmem:[#allocation2 + $0x1c] sm:$0xf]
        %v434 = vld [vmem:[#allocation2 + $0x20] sm:$0xf]
        %v435 = vld [vmem:[#allocation2 + $0x24] sm:$0xf]
        %v436 = vld [vmem:[#allocation2 + $0x28] sm:$0xf]
        %v437 = vld [vmem:[#allocation2 + $0x2c] sm:$0xf]
        %v438 = vld [vmem:[#allocation2 + $0x30] sm:$0xf]
        %v439 = vld [vmem:[#allocation2 + $0x34] sm:$0xf]
        %v440 = vld [vmem:[#allocation2 + $0x38] sm:$0xf]
        %v441 = vld [vmem:[#allocation2 + $0x3c] sm:$0xf]
        %v442 = vld [vmem:[%s4] sm:$0x1]
        %v444 = vlaneseq
        %v445 = vshrl.u32 %v444, 7
        %v446 = vsub.s32 0, %v445
        %v447 = vrot.slane %v442, %v446
        %v465 = vunpack.c.l.b16 %v426
        %v466 = vunpack.c.l.b16 %v427
        %v467 = vunpack.c.l.b16 %v428
        %v468 = vunpack.c.l.b16 %v429
        %v469 = vunpack.c.l.b16 %v430
        %v470 = vunpack.c.l.b16 %v431
        %v471 = vunpack.c.l.b16 %v432
        %v472 = vunpack.c.l.b16 %v433
        %v473 = vunpack.c.l.b16 %v434
        %v474 = vunpack.c.l.b16 %v435
        %v475 = vunpack.c.l.b16 %v436
        %v476 = vunpack.c.l.b16 %v437
        %v477 = vunpack.c.l.b16 %v438
        %v478 = vunpack.c.l.b16 %v439
        %v479 = vunpack.c.l.b16 %v440
        %v480 = vunpack.c.l.b16 %v441
        %v481 = vpack.c.b16 %v466, %v465
        %v482 = vpack.c.b16 %v468, %v467
        %v483 = vpack.c.b16 %v470, %v469
        %v484 = vpack.c.b16 %v472, %v471
        %v485 = vpack.c.b16 %v474, %v473
        %v486 = vpack.c.b16 %v476, %v475
        %v487 = vpack.c.b16 %v478, %v477
        %v488 = vpack.c.b16 %v480, %v479
        %497 = vmatprep.subr.bf16.mxu0 0
        %498 = vmatpush1.bf16.msra.mxu0 %v488
        %499 = vmatprep.subr.bf16.mxu0 0
        %500 = vmatpush1.bf16.msra.mxu0 %v487
        %501 = vmatprep.subr.bf16.mxu0 0
        %502 = vmatpush1.bf16.msra.mxu0 %v486
        %503 = vmatprep.subr.bf16.mxu0 0
        %504 = vmatpush1.bf16.msra.mxu0 %v485
        %505 = vmatprep.subr.bf16.mxu0 0
        %506 = vmatpush1.bf16.msra.mxu0 %v484
        %507 = vmatprep.subr.bf16.mxu0 0
        %508 = vmatpush1.bf16.msra.mxu0 %v483
        %509 = vmatprep.subr.bf16.mxu0 0
        %510 = vmatpush1.bf16.msra.mxu0 %v482
        %511 = vmatprep.subr.bf16.mxu0 0
        %512 = vmatpush1.bf16.msra.mxu0 %v481
        %513 = vmatprep.subr.bf16.mxu0 0
        %514 = vmatpush2.bf16.msra.mxu0 0
        %515 = vmatprep.subr.bf16.mxu0 0
        %516 = vmatpush2.bf16.msra.mxu0 0
        %517 = vmatprep.subr.bf16.mxu0 0
        %518 = vmatpush2.bf16.msra.mxu0 0
        %519 = vmatprep.subr.bf16.mxu0 0
        %520 = vmatpush2.bf16.msra.mxu0 0
        %521 = vmatprep.subr.bf16.mxu0 0
        %522 = vmatpush2.bf16.msra.mxu0 0
        %523 = vmatprep.subr.bf16.mxu0 0
        %524 = vmatpush2.bf16.msra.mxu0 0
        %525 = vmatprep.subr.bf16.mxu0 0
        %526 = vmatpush2.bf16.msra.mxu0 0
        %527 = vmatprep.subr.bf16.mxu0 0
        %528 = vmatpush2.bf16.msra.mxu0 0
        %529 = vmatprep.mubr.bf16.mxu0 0
        %530 = vmatmul.mubr.bf16.gmra.mxu0 %v425
        %v531 = vpop.f32.mrf.mxu0
        %v532 = vadd.f32 %v447, %v531
        %v533 = vpop.f32.mrf.mxu0
        %v534 = vpop.f32.mrf.mxu0
        %v535 = vadd.f32 %v447, %v534
        %v536 = vpop.f32.mrf.mxu0
        %537 = vdwg.mxu0
        %vm538 = vcmp.gt.f32.partialorder %v532, 0.0
        %vm539 = vcmp.gt.f32.partialorder %v535, 0.0
        %v540 = vmul.f32 %v532, 0.01
        %v541 = vmul.f32 %v535, 0.01
        %v542 = vsel %vm538, %v532, %v540
        %v543 = vsel %vm539, %v535, %v541
        %v544 = vpack.c.bf16 %v543, %v542
        %v545 = vld [vmem:[#allocation5] sm:$0xf]
        %v546 = vld [vmem:[#allocation5 + $0x4] sm:$0xf]
        %v547 = vld [vmem:[#allocation5 + $0x8] sm:$0xf]
        %v548 = vld [vmem:[#allocation5 + $0xc] sm:$0xf]
        %v549 = vld [vmem:[#allocation5 + $0x10] sm:$0xf]
        %v550 = vld [vmem:[#allocation5 + $0x14] sm:$0xf]
        %v551 = vld [vmem:[#allocation5 + $0x18] sm:$0xf]
        %v552 = vld [vmem:[#allocation5 + $0x1c] sm:$0xf]
        %v553 = vld [vmem:[#allocation5 + $0x20] sm:$0xf]
        %v554 = vld [vmem:[#allocation5 + $0x24] sm:$0xf]
        %v555 = vld [vmem:[#allocation5 + $0x28] sm:$0xf]
        %v556 = vld [vmem:[#allocation5 + $0x2c] sm:$0xf]
        %v557 = vld [vmem:[#allocation5 + $0x30] sm:$0xf]
        %v558 = vld [vmem:[#allocation5 + $0x34] sm:$0xf]
        %v559 = vld [vmem:[#allocation5 + $0x38] sm:$0xf]
        %v560 = vld [vmem:[#allocation5 + $0x3c] sm:$0xf]
        %v561 = vld [vmem:[%s6] sm:$0x1]
        %v563 = vlaneseq
        %v564 = vshrl.u32 %v563, 7
        %v565 = vsub.s32 0, %v564
        %v566 = vrot.slane %v561, %v565
        %v584 = vunpack.c.l.b16 %v545
        %v585 = vunpack.c.l.b16 %v546
        %v586 = vunpack.c.l.b16 %v547
        %v587 = vunpack.c.l.b16 %v548
        %v588 = vunpack.c.l.b16 %v549
        %v589 = vunpack.c.l.b16 %v550
        %v590 = vunpack.c.l.b16 %v551
        %v591 = vunpack.c.l.b16 %v552
        %v592 = vunpack.c.l.b16 %v553
        %v593 = vunpack.c.l.b16 %v554
        %v594 = vunpack.c.l.b16 %v555
        %v595 = vunpack.c.l.b16 %v556
        %v596 = vunpack.c.l.b16 %v557
        %v597 = vunpack.c.l.b16 %v558
        %v598 = vunpack.c.l.b16 %v559
        %v599 = vunpack.c.l.b16 %v560
        %v600 = vpack.c.b16 %v585, %v584
        %v601 = vpack.c.b16 %v587, %v586
        %v602 = vpack.c.b16 %v589, %v588
        %v603 = vpack.c.b16 %v591, %v590
        %v604 = vpack.c.b16 %v593, %v592
        %v605 = vpack.c.b16 %v595, %v594
        %v606 = vpack.c.b16 %v597, %v596
        %v607 = vpack.c.b16 %v599, %v598
        %616 = vmatprep.subr.bf16.mxu0 0
        %617 = vmatpush1.bf16.msra.mxu0 %v607
        %618 = vmatprep.subr.bf16.mxu0 0
        %619 = vmatpush1.bf16.msra.mxu0 %v606
        %620 = vmatprep.subr.bf16.mxu0 0
        %621 = vmatpush1.bf16.msra.mxu0 %v605
        %622 = vmatprep.subr.bf16.mxu0 0
        %623 = vmatpush1.bf16.msra.mxu0 %v604
        %624 = vmatprep.subr.bf16.mxu0 0
        %625 = vmatpush1.bf16.msra.mxu0 %v603
        %626 = vmatprep.subr.bf16.mxu0 0
        %627 = vmatpush1.bf16.msra.mxu0 %v602
        %628 = vmatprep.subr.bf16.mxu0 0
        %629 = vmatpush1.bf16.msra.mxu0 %v601
        %630 = vmatprep.subr.bf16.mxu0 0
        %631 = vmatpush1.bf16.msra.mxu0 %v600
        %632 = vmatprep.subr.bf16.mxu0 0
        %633 = vmatpush2.bf16.msra.mxu0 0
        %634 = vmatprep.subr.bf16.mxu0 0
        %635 = vmatpush2.bf16.msra.mxu0 0
        %636 = vmatprep.subr.bf16.mxu0 0
        %637 = vmatpush2.bf16.msra.mxu0 0
        %638 = vmatprep.subr.bf16.mxu0 0
        %639 = vmatpush2.bf16.msra.mxu0 0
        %640 = vmatprep.subr.bf16.mxu0 0
        %641 = vmatpush2.bf16.msra.mxu0 0
        %642 = vmatprep.subr.bf16.mxu0 0
        %643 = vmatpush2.bf16.msra.mxu0 0
        %644 = vmatprep.subr.bf16.mxu0 0
        %645 = vmatpush2.bf16.msra.mxu0 0
        %646 = vmatprep.subr.bf16.mxu0 0
        %647 = vmatpush2.bf16.msra.mxu0 0
        %648 = vmatprep.mubr.bf16.mxu0 0
        %649 = vmatmul.mubr.bf16.gmra.mxu0 %v544
        %v650 = vpop.f32.mrf.mxu0
        %v651 = vadd.f32 %v566, %v650
        %v652 = vpop.f32.mrf.mxu0
        %v653 = vpop.f32.mrf.mxu0
        %v654 = vadd.f32 %v566, %v653
        %v655 = vpop.f32.mrf.mxu0
        %656 = vdwg.mxu0
        %v657 = vlaneseq
        %v658 = vand.u32 %v657, 127
        %vm659 = vcmp.ge.s32.totalorder %v658, 0
        %vm660 = vcmp.lt.s32.totalorder %v658, 4
        %vm661 = vmand %vm659, %vm660
        %v662 = vsel %vm661, 1, 0
        %vm663 = vcmp.eq.s32.totalorder %v662, 1
        %v664 = vsel %vm663, %v651, -1e+30
        %v665 = vsel %vm663, %v654, -1e+30
        %666 = vmax.xlane.f32.xlu0 %v664
        %v667 = vpop.xlane.xlu0 %666
        %668 = vmax.xlane.f32.xlu0 %v665
        %v669 = vpop.xlane.xlu0 %668
        %v670 = vsel %vm663, %v667, 0.0
        %v671 = vsel %vm663, %v669, 0.0
        %vm672 = vcmp.ge.s32.totalorder %v658, 4
        %vm673 = vcmp.lt.s32.totalorder %v658, 12
        %vm674 = vmand %vm672, %vm673
        %v675 = vsel %vm674, 1, 0
        %vm676 = vcmp.eq.s32.totalorder %v675, 1
        %v677 = vsel %vm676, %v651, -1e+30
        %v678 = vsel %vm676, %v654, -1e+30
        %679 = vmax.xlane.f32.xlu0 %v677
        %v680 = vpop.xlane.xlu0 %679
        %681 = vmax.xlane.f32.xlu0 %v678
        %v682 = vpop.xlane.xlu0 %681
        %v683 = vsel %vm676, %v680, %v670
        %v684 = vsel %vm676, %v682, %v671
        %vm685 = vcmp.ge.s32.totalorder %v658, 12
        %vm686 = vcmp.lt.s32.totalorder %v658, 16
        %vm687 = vmand %vm685, %vm686
        %v688 = vsel %vm687, 1, 0
        %vm689 = vcmp.eq.s32.totalorder %v688, 1
        %v690 = vsel %vm689, %v651, -1e+30
        %v691 = vsel %vm689, %v654, -1e+30
        %692 = vmax.xlane.f32.xlu0 %v690
        %v693 = vpop.xlane.xlu0 %692
        %694 = vmax.xlane.f32.xlu0 %v691
        %v695 = vpop.xlane.xlu0 %694
        %v696 = vsel %vm689, %v693, %v683
        %v697 = vsel %vm689, %v695, %v684
        %vm698 = vcmp.ge.s32.totalorder %v658, 16
        %vm699 = vcmp.lt.s32.totalorder %v658, 128
        %vm700 = vmand %vm698, %vm699
        %v701 = vsel %vm700, 1, 0
        %vm702 = vcmp.eq.s32.totalorder %v701, 1
        %v703 = vsel %vm702, %v651, -1e+30
        %v704 = vsel %vm702, %v654, -1e+30
        %705 = vmax.xlane.f32.xlu0 %v703
        %v706 = vpop.xlane.xlu0 %705
        %707 = vmax.xlane.f32.xlu0 %v704
        %v708 = vpop.xlane.xlu0 %707
        %v709 = vsel %vm702, %v706, %v696
        %v710 = vsel %vm702, %v708, %v697
        %v711 = vsub.f32 %v651, %v709
        %v712 = vsub.f32 %v654, %v710
        %v713 = vmul.f32 %v711, 1.442695
        %v714 = vpow.pop %v713
        %v715 = vmul.f32 %v712, 1.442695
        %v716 = vpow.pop %v715
        %v717 = vpack.c.bf16 %v716, %v714
        %v718 = vld [vmem:[#allocation7] sm:$0xf]
        %v719 = vld [vmem:[#allocation7 + $0x4] sm:$0xf]
        %v720 = vld [vmem:[#allocation7 + $0x8] sm:$0xf]
        %v721 = vld [vmem:[#allocation7 + $0xc] sm:$0xf]
        %v722 = vld [vmem:[#allocation7 + $0x10] sm:$0xf]
        %v723 = vld [vmem:[#allocation7 + $0x14] sm:$0xf]
        %v724 = vld [vmem:[#allocation7 + $0x18] sm:$0xf]
        %v725 = vld [vmem:[#allocation7 + $0x1c] sm:$0xf]
        %v726 = vld [vmem:[#allocation7 + $0x20] sm:$0xf]
        %v727 = vld [vmem:[#allocation7 + $0x24] sm:$0xf]
        %v728 = vld [vmem:[#allocation7 + $0x28] sm:$0xf]
        %v729 = vld [vmem:[#allocation7 + $0x2c] sm:$0xf]
        %v730 = vld [vmem:[#allocation7 + $0x30] sm:$0xf]
        %v731 = vld [vmem:[#allocation7 + $0x34] sm:$0xf]
        %v732 = vld [vmem:[#allocation7 + $0x38] sm:$0xf]
        %v733 = vld [vmem:[#allocation7 + $0x3c] sm:$0xf]
        %v750 = vunpack.c.l.b16 %v718
        %v751 = vunpack.c.l.b16 %v719
        %v752 = vunpack.c.l.b16 %v720
        %v753 = vunpack.c.l.b16 %v721
        %v754 = vunpack.c.l.b16 %v722
        %v755 = vunpack.c.l.b16 %v723
        %v756 = vunpack.c.l.b16 %v724
        %v757 = vunpack.c.l.b16 %v725
        %v758 = vunpack.c.l.b16 %v726
        %v759 = vunpack.c.l.b16 %v727
        %v760 = vunpack.c.l.b16 %v728
        %v761 = vunpack.c.l.b16 %v729
        %v762 = vunpack.c.l.b16 %v730
        %v763 = vunpack.c.l.b16 %v731
        %v764 = vunpack.c.l.b16 %v732
        %v765 = vunpack.c.l.b16 %v733
        %v766 = vpack.c.b16 %v751, %v750
        %v767 = vpack.c.b16 %v753, %v752
        %v768 = vpack.c.b16 %v755, %v754
        %v769 = vpack.c.b16 %v757, %v756
        %v770 = vpack.c.b16 %v759, %v758
        %v771 = vpack.c.b16 %v761, %v760
        %v772 = vpack.c.b16 %v763, %v762
        %v773 = vpack.c.b16 %v765, %v764
        %782 = vmatprep.subr.bf16.mxu0 0
        %783 = vmatpush1.bf16.msra.mxu0 %v773
        %784 = vmatprep.subr.bf16.mxu0 0
        %785 = vmatpush1.bf16.msra.mxu0 %v772
        %786 = vmatprep.subr.bf16.mxu0 0
        %787 = vmatpush1.bf16.msra.mxu0 %v771
        %788 = vmatprep.subr.bf16.mxu0 0
        %789 = vmatpush1.bf16.msra.mxu0 %v770
        %790 = vmatprep.subr.bf16.mxu0 0
        %791 = vmatpush1.bf16.msra.mxu0 %v769
        %792 = vmatprep.subr.bf16.mxu0 0
        %793 = vmatpush1.bf16.msra.mxu0 %v768
        %794 = vmatprep.subr.bf16.mxu0 0
        %795 = vmatpush1.bf16.msra.mxu0 %v767
        %796 = vmatprep.subr.bf16.mxu0 0
        %797 = vmatpush1.bf16.msra.mxu0 %v766
        %798 = vmatprep.subr.bf16.mxu0 0
        %799 = vmatpush2.bf16.msra.mxu0 0
        %800 = vmatprep.subr.bf16.mxu0 0
        %801 = vmatpush2.bf16.msra.mxu0 0
        %802 = vmatprep.subr.bf16.mxu0 0
        %803 = vmatpush2.bf16.msra.mxu0 0
        %804 = vmatprep.subr.bf16.mxu0 0
        %805 = vmatpush2.bf16.msra.mxu0 0
        %806 = vmatprep.subr.bf16.mxu0 0
        %807 = vmatpush2.bf16.msra.mxu0 0
        %808 = vmatprep.subr.bf16.mxu0 0
        %809 = vmatpush2.bf16.msra.mxu0 0
        %810 = vmatprep.subr.bf16.mxu0 0
        %811 = vmatpush2.bf16.msra.mxu0 0
        %812 = vmatprep.subr.bf16.mxu0 0
        %813 = vmatpush2.bf16.msra.mxu0 0
        %814 = vmatprep.mubr.bf16.mxu0 0
        %815 = vmatmul.mubr.bf16.gmra.mxu0 %v717
        %v816 = vpop.f32.mrf.mxu0
        %v817 = vadd.f32 0.0, %v816
        %v818 = vpop.f32.mrf.mxu0
        %v819 = vpop.f32.mrf.mxu0
        %v820 = vadd.f32 0.0, %v819
        %v821 = vpop.f32.mrf.mxu0
        %822 = vdwg.mxu0
        %v823 = vunpack.c.l.bf16 %v717
        %v824 = vunpack.c.h.bf16 %v717
        %v825 = vrcp.pop %v817
        %v826 = vmul.f32 %v823, %v825
        %v827 = vrcp.pop %v820
        %v828 = vmul.f32 %v824, %v827
        %829 = vst [vmem:[%s343] sm:$0xff] %v826
        %830 = vst [vmem:[%s343 + $0x8] sm:$0xff] %v828
        %s831 = sand.u32 %s205, 1
        %s832 = scalar_lea.sflag [#allocation4], %s831
        %s833 = sand.u32 %s205, 1
        %s834 = smul.addr %s833, 16
        %s835 = scalar_lea.vmem [#allocation8], %s834
        // Predicated region
        $region65: #{tpu_custom_call.1} parent=51 // pred_check
          %p836 = pneg %p215
        $region66: #{tpu_custom_call.1} parent=51 // pred_check_branch
          %838 = sbr.rel (%p836) target = $region68
        $region67: #{tpu_custom_call.1} parent=51 // pred_region
          %s839 = smul.u32 2, %s24
          %s841 = ssub.s32 256, 256
          %842 = vsyncadd %s832, %s841
          %s843 = smul.addr %s839, 128
          %s844 = scalar_lea.hbm %s8, %s843
          %s845 = sshll.u32 %s835, 4
          %s846 = int_to_ptr.vmem [resolvable:$true] %s845
          %851 = dma.vmem_to_hbm [thread:$0]  %s846, 256, %s844, %s832, 128, 128, 8
        $region68: #{tpu_custom_call.1} parent=51 // pred_fallthru
          _
      $region52: #{tpu_custom_call.1} parent=5 // pred_fallthru
        _
      %p852 = scmp.le.s32.totalorder 2, %s19
      // Predicated region
      $region69: #{tpu_custom_call.1} parent=5 // pred_check
        %p853 = pneg %p852
      $region70: #{tpu_custom_call.1} parent=5 // pred_check_branch
        %855 = sbr.rel (%p853) target = $region72
      $region71: #{tpu_custom_call.1} parent=5 // pred_region
        %s856 = ssub.s32 %s19, 2
        // Predicated region
        $region73: #{tpu_custom_call.1} parent=71 // pred_check
          %p857 = pneg %p221
        $region74: #{tpu_custom_call.1} parent=71 // pred_check_branch
          %859 = sbr.rel (%p857) target = $region76
        $region75: #{tpu_custom_call.1} parent=71 // pred_region
          %s860 = sand.u32 %s206, 1
          %s861 = scalar_lea.sflag [#allocation4], %s860
          %s862 = sand.u32 %s206, 1
          %s863 = smul.addr %s862, 16
          %s864 = scalar_lea.vmem [#allocation8], %s863
          %865 = dma.done %s861, 256
        $region76: #{tpu_custom_call.1} parent=71 // pred_fallthru
          _
      $region72: #{tpu_custom_call.1} parent=5 // pred_fallthru
        _
    $region6: #{tpu_custom_call.1} parent=1 // loop_footer
      %s23 = sadd.s32 1, %s19
    $region7: #{tpu_custom_call.1} parent=1 // loop_footer_branch
      %18 = sbr.rel target = $region3
    $region8: #{tpu_custom_call.1} parent=1 // loop_exit
      _
    %866 = vsyncpa [#allocation3], 1
    %s867 = scalar_lea.sflag [#allocation3], 1
    %868 = vsyncpa %s867, 1
    %869 = vsyncpa [#allocation6], 1
    %870 = vsyncpa [#allocation4], 1
    %s871 = scalar_lea.sflag [#allocation4], 1
    %872 = vsyncpa %s871, 1

</llo_original>
